<compile_context>
chip_gen: v6e
topology: v6e:2x2x1
jax: 0.10.0
libtpu: 0.0.40
codegen_flags: <defaults>
</compile_context>

<pallas_src>
import math
from functools import partial

import jax
import jax.numpy as jnp
from jax.experimental import pallas as pl
from jax.experimental.pallas import tpu as pltpu


def _cdiv(a, b):
    return -(-a // b)


def _round_up(x, m):
    return _cdiv(x, m) * m


def pointer_kernel(q_ref, t_ref, mb_ref, wcomb_ref, bcomb_ref, wv_ref, bv_ref,
                   alpha_ref, ret_ref, *, C, input_size, use_mxu_vsum):
    # q_ref:     [TB, I]     queries for this batch tile
    # t_ref:     [TB, S, I]  targets (native layout, I on the lane axis)
    # mb_ref:    [TB, S]     fp32 additive mask bias (0.0 / -100000.0)
    # wcomb_ref: [I, I+1]    [Wq^T Wk | Wq^T bk]
    # bcomb_ref: [1, I+1]    [bq Wk   | bq.bk ]
    # wv_ref:    [I, 1] (MXU path) or [1, I] (VPU path)   sum_h Wv[h, :]
    # bv_ref:    [1, 1]      sum_h bv[h]
    I = input_size
    q = q_ref[...]
    t = t_ref[...]

    # --- folded Q/K projections: one MXU matmul -------------------------------
    we = jnp.dot(q, wcomb_ref[...], preferred_element_type=jnp.float32) + bcomb_ref[...]  # [TB, I+1]
    w_eff = we[:, :I]              # [TB, I]
    qk_bias = we[:, I:I + 1]       # [TB, 1]

    # --- scores: single streamed pass over target, contracting I (lane axis) --
    # TODO(synk): verify in the bundle dump that the broadcast product is not
    #             materialized and `t` feeds both contractions from one VMEM read.
    qk = jnp.sum(w_eff[:, None, :] * t, axis=-1) + qk_bias                       # [TB, S]
    qk = C * jnp.tanh(qk) + mb_ref[...]                                          # additive mask bias

    # --- numerically stable softmax over the sequence axis --------------------
    m = jnp.max(qk, axis=-1, keepdims=True)
    e = jnp.exp(qk - m)
    alpha = e * pl.reciprocal(jnp.sum(e, axis=-1, keepdims=True), approx=True)   # [TB, S]

    # --- V branch folded to one contraction over I -----------------------------
    if use_mxu_vsum:
        TB, S, _ = t.shape
        t2d = t.reshape(TB * S, I)                                                # layout-preserving (S % 8 == 0)
        vsum = jnp.dot(t2d, wv_ref[...],
                       preferred_element_type=jnp.float32).reshape(TB, S)         # MXU matvec
    else:
        vsum = jnp.sum(wv_ref[...][None] * t, axis=-1)                            # VPU fallback
    vsum = vsum + bv_ref[...]                                                     # [TB, S]

    alpha_ref[...] = alpha
    ret_ref[...] = alpha * vsum


def _vmem_capacity_bytes():
    try:
        info = pltpu.get_tpu_info()
        cap = getattr(info, "vmem_capacity_bytes", None)
        if cap:
            return int(cap)
    except Exception:
        pass
    return 64 * 1024 * 1024   # conservative fallback: v7x per-TensorCore VMEM


def _vmem_usage_bytes(TB, S, I):
    """Padding-aware accounting of the kernel's (double-buffered) VMEM footprint."""
    Sp8 = _round_up(S, 8)          # sublane padding of S
    Ip = _round_up(I, 128)         # lane padding of I
    Sl = _round_up(S, 128)         # lane padding of S (2-D tiles with S on lanes)
    Ipp = _round_up(I + 1, 128)
    TBp = _round_up(TB, 8)
    total = 0
    total += 2 * TB * Sp8 * Ip * 4           # target slab (dominant)
    total += 2 * TBp * Ip * 4                # query tile
    total += 2 * TBp * Sl * 4                # mask-bias tile
    total += 2 * 2 * TBp * Sl * 4            # alpha / ret output tiles
    total += 2 * _round_up(I, 8) * Ipp * 4   # W_comb
    total += 2 * 8 * Ipp * 4                 # b_comb
    total += 2 * _round_up(I, 8) * 128 * 4   # wv
    total += 2 * 8 * 128 * 4                 # bv_sum
    return total


def _choose_tb(B, S, I, cap_bytes):
    """Largest batch tile whose padded, double-buffered target block fits the budget,
    while keeping at least two grid steps (v7x has 2 TensorCores per chip)."""
    per_row = _round_up(S, 8) * _round_up(I, 128) * 4    # padded bytes of one target row
    # Per-buffer budget: larger on v5e/v6e (128 MiB VMEM), conservative on v7x (64 MiB).
    budget = (20 << 20) if cap_bytes >= (100 << 20) else (12 << 20)
    rows = max(8, (budget // max(1, per_row)) // 8 * 8)
    rows = min(rows, max(8, _round_up(_cdiv(B, 2), 8)))  # guarantee >= 2 grid steps
    # TODO(synk): if even 8 padded rows exceed the budget (very large S*I), tile S with
    #             an online-softmax accumulator instead of oversizing VMEM.
    return rows


def pointer_forward(query, target, mask, params, C=10.0):
    """query: [B, I] f32, target: [B, S, I] f32, mask: [B, S] bool (or None).

    Returns (alpha, ret), both [B, S] f32 — same semantics as Pointer.forward.
    """
    B, S, I = target.shape
    Wq, bq = params["Wq"], params["bq"]   # [H, I], [H]
    Wk, bk = params["Wk"], params["bk"]
    Wv, bv = params["Wv"], params["bv"]

    # --- one-time algebraic folding of all three projections (tiny, O(I^2)) ----
    M = Wq.T @ Wk                                        # [I, I]
    r = bq @ Wk                                          # [I]
    c = Wq.T @ bk                                        # [I]
    s = jnp.dot(bq, bk)                                  # []
    W_comb = jnp.concatenate([M, c[:, None]], axis=1)    # [I, I+1]
    b_comb = jnp.concatenate([r, s[None]])[None, :]      # [1, I+1]
    wv_sum = jnp.sum(Wv, axis=0)                         # [I]   (folds the whole V projection)
    bv_arg = jnp.sum(bv)[None, None]                     # [1, 1]

    if mask is None:
        mask_bias = jnp.zeros((B, S), jnp.float32)
    else:
        mask_bias = jnp.where(mask, -100000.0, 0.0).astype(jnp.float32)

    cap = _vmem_capacity_bytes()
    TB = _choose_tb(B, S, I, cap)
    Bp = max(_round_up(B, TB), 2 * TB)                   # always >= 2 grid steps
    if Bp != B:
        pad = Bp - B
        query = jnp.pad(query, ((0, pad), (0, 0)))
        target = jnp.pad(target, ((0, pad), (0, 0), (0, 0)))
        mask_bias = jnp.pad(mask_bias, ((0, pad), (0, 0)))

    need = _vmem_usage_bytes(TB, S, I)
    vmem_limit = max(int(need * 1.3) + (2 << 20), 32 << 20)
    vmem_limit = min(vmem_limit, max(32 << 20, int(cap * 0.9)))

    def run(use_mxu_vsum):
        if use_mxu_vsum:
            wv_arg = wv_sum[:, None]                               # [I, 1]  (MXU matvec RHS)
            wv_spec = pl.BlockSpec((I, 1), lambda b: (0, 0))
        else:
            wv_arg = wv_sum[None, :]                               # [1, I]  (VPU broadcast row)
            wv_spec = pl.BlockSpec((1, I), lambda b: (0, 0))
        return pl.pallas_call(
            partial(pointer_kernel, C=C, input_size=I, use_mxu_vsum=use_mxu_vsum),
            out_shape=(jax.ShapeDtypeStruct((Bp, S), jnp.float32),
                       jax.ShapeDtypeStruct((Bp, S), jnp.float32)),
            grid=(Bp // TB,),
            in_specs=[
                pl.BlockSpec((TB, I), lambda b: (b, 0)),           # query tile
                pl.BlockSpec((TB, S, I), lambda b: (b, 0, 0)),     # target tile (native layout)
                pl.BlockSpec((TB, S), lambda b: (b, 0)),           # mask-bias tile
                pl.BlockSpec((I, I + 1), lambda b: (0, 0)),        # [Wq^T Wk | Wq^T bk]
                pl.BlockSpec((1, I + 1), lambda b: (0, 0)),        # [bq Wk | bq.bk]
                wv_spec,                                           # folded Wv
                pl.BlockSpec((1, 1), lambda b: (0, 0)),            # folded bv
            ],
            out_specs=(pl.BlockSpec((TB, S), lambda b: (b, 0)),
                       pl.BlockSpec((TB, S), lambda b: (b, 0))),
            compiler_params=pltpu.CompilerParams(
                dimension_semantics=("parallel",),
                vmem_limit_bytes=vmem_limit),
        )(query, target, mask_bias, W_comb, b_comb, wv_arg, bv_arg)

    if S % 8 == 0:
        try:
            alpha, ret = run(use_mxu_vsum=True)
            jax.block_until_ready((alpha, ret))
        except Exception:
            alpha, ret = run(use_mxu_vsum=False)   # robust fallback if the MXU variant fails to lower
    else:
        alpha, ret = run(use_mxu_vsum=False)

    return alpha[:B], ret[:B]


def pointer_reference(query, target, mask, params, C=10.0):
    """Plain-JAX reference mirroring the PyTorch forward exactly."""
    q_c = query @ params["Wq"].T + params["bq"]
    k = target @ params["Wk"].T + params["bk"]
    v = target @ params["Wv"].T + params["bv"]
    qk = jnp.einsum("ik,ijk->ij", q_c, k)
    qk = C * jnp.tanh(qk)
    if mask is not None:
        qk = jnp.where(mask, -100000.0, qk)
    alpha = jax.nn.softmax(qk, axis=-1)
    ret = alpha * jnp.sum(v, axis=-1)   # einsum('ij,ijk->ij') == alpha * v.sum(-1)
    return alpha, ret


def init_params(key, input_size, hidden_size):
    """Deterministic nn.Linear-style init: U(-1/sqrt(in), 1/sqrt(in))."""
    bound = 1.0 / math.sqrt(input_size)
    ks = jax.random.split(key, 6)
    u = lambda k, shape: jax.random.uniform(k, shape, jnp.float32, -bound, bound)
    return {
        "Wq": u(ks[0], (hidden_size, input_size)), "bq": u(ks[1], (hidden_size,)),
        "Wk": u(ks[2], (hidden_size, input_size)), "bk": u(ks[3], (hidden_size,)),
        "Wv": u(ks[4], (hidden_size, input_size)), "bv": u(ks[5], (hidden_size,)),
    }


if __name__ == "__main__":
    B, S, I, H = 2, 8, 32, 32
    C = 10.0

    root = jax.random.PRNGKey(0)
    k_params, k_q, k_t, k_m = jax.random.split(root, 4)

    params = init_params(k_params, I, H)
    query = jax.random.normal(k_q, (B, I), dtype=jnp.float32)
    target = jax.random.normal(k_t, (B, S, I), dtype=jnp.float32)
    mask = jax.random.uniform(k_m, (B, S)) < 0.25          # bool [B, S]
    mask = mask.at[:, 0].set(False)                        # keep >= 1 unmasked entry per row

    alpha, ret = pointer_forward(query, target, mask, params, C=C)
    alpha, ret = jax.block_until_ready((alpha, ret))

    alpha_ref, ret_ref = pointer_reference(query, target, mask, params, C=C)

    assert alpha.shape == (B, S) and ret.shape == (B, S)
    assert jnp.allclose(alpha, alpha_ref, atol=2e-3, rtol=2e-3), "alpha mismatch"
    assert jnp.allclose(ret, ret_ref, atol=2e-3, rtol=2e-3), "ret mismatch"

    print("KERNEL_OK")
</pallas_src>

<mosaic_0001>
module attributes {stable_mosaic.version = 11 : i64} {
  func.func @pointer_kernel(%arg0: i32, %arg1: memref<8x32xf32, #tpu.memory_space<vmem>>, %arg2: memref<8x8x32xf32, #tpu.memory_space<vmem>>, %arg3: memref<8x8xf32, #tpu.memory_space<vmem>>, %arg4: memref<32x33xf32, #tpu.memory_space<vmem>>, %arg5: memref<1x33xf32, #tpu.memory_space<vmem>>, %arg6: memref<32x1xf32, #tpu.memory_space<vmem>>, %arg7: memref<1x1xf32, #tpu.memory_space<vmem>>, %arg8: memref<8x8xf32, #tpu.memory_space<vmem>>, %arg9: memref<8x8xf32, #tpu.memory_space<vmem>>) attributes {dimension_semantics = [#tpu.dimension_semantics<parallel>], iteration_bounds = array<i64: 2>, scalar_prefetch = 0 : i64, scratch_operands = 0 : i64, tpu.core_type = #tpu.core_type<tc>, window_params = [{transform_indices = @transform_0, window_bounds = array<i64: 8, 32>}, {transform_indices = @transform_1, window_bounds = array<i64: 8, 8, 32>}, {transform_indices = @transform_2, window_bounds = array<i64: 8, 8>}, {pipeline_mode = #tpu.pipeline_mode<synchronous>, transform_indices = @transform_3, window_bounds = array<i64: 32, 33>}, {pipeline_mode = #tpu.pipeline_mode<synchronous>, transform_indices = @transform_4, window_bounds = array<i64: 1, 33>}, {pipeline_mode = #tpu.pipeline_mode<synchronous>, transform_indices = @transform_5, window_bounds = array<i64: 32, 1>}, {pipeline_mode = #tpu.pipeline_mode<synchronous>, transform_indices = @transform_6, window_bounds = array<i64: 1, 1>}, {transform_indices = @transform_7, window_bounds = array<i64: 8, 8>}, {transform_indices = @transform_8, window_bounds = array<i64: 8, 8>}]} {
    %c0 = arith.constant 0 : index
    %c0_0 = arith.constant 0 : index
    %0 = vector.load %arg1[%c0, %c0_0] : memref<8x32xf32, #tpu.memory_space<vmem>>, vector<8x32xf32>
    %c0_1 = arith.constant 0 : index
    %c0_2 = arith.constant 0 : index
    %c0_3 = arith.constant 0 : index
    %1 = vector.load %arg2[%c0_1, %c0_2, %c0_3] : memref<8x8x32xf32, #tpu.memory_space<vmem>>, vector<8x8x32xf32>
    %c0_4 = arith.constant 0 : index
    %c0_5 = arith.constant 0 : index
    %2 = vector.load %arg4[%c0_4, %c0_5] : memref<32x33xf32, #tpu.memory_space<vmem>>, vector<32x33xf32>
    %cst = arith.constant dense<0.000000e+00> : vector<8x33xf32>
    %3 = tpu.matmul %0, %2, %cst {dimension_numbers = #tpu.dot_dimension_numbers<[1], [0], [0], [1], [0, 0, 1, 1], [], []>} : vector<8x32xf32>, vector<32x33xf32>, vector<8x33xf32> -> vector<8x33xf32>
    %c0_6 = arith.constant 0 : index
    %c0_7 = arith.constant 0 : index
    %4 = vector.load %arg5[%c0_6, %c0_7] : memref<1x33xf32, #tpu.memory_space<vmem>>, vector<1x33xf32>
    %5 = vector.broadcast %4 : vector<1x33xf32> to vector<8x33xf32>
    %6 = arith.addf %3, %5 : vector<8x33xf32>
    %7 = vector.extract_strided_slice %6 {offsets = [0, 0], sizes = [8, 32], strides = [1, 1]} : vector<8x33xf32> to vector<8x32xf32>
    %8 = vector.extract_strided_slice %6 {offsets = [0, 32], sizes = [8, 1], strides = [1, 1]} : vector<8x33xf32> to vector<8x1xf32>
    %9 = vector.shape_cast %7 : vector<8x32xf32> to vector<8x1x32xf32>
    %10 = vector.broadcast %9 : vector<8x1x32xf32> to vector<8x8x32xf32>
    %11 = arith.mulf %10, %1 : vector<8x8x32xf32>
    %cst_8 = arith.constant dense<0.000000e+00> : vector<8x8xf32>
    %12 = vector.multi_reduction <add>, %11, %cst_8 [2] : vector<8x8x32xf32> to vector<8x8xf32>
    %13 = vector.broadcast %8 : vector<8x1xf32> to vector<8x8xf32>
    %14 = arith.addf %12, %13 : vector<8x8xf32>
    %15 = math.tanh %14 : vector<8x8xf32>
    %cst_9 = arith.constant 1.000000e+01 : f32
    %16 = vector.broadcast %cst_9 : f32 to vector<8x8xf32>
    %17 = arith.mulf %16, %15 : vector<8x8xf32>
    %c0_10 = arith.constant 0 : index
    %c0_11 = arith.constant 0 : index
    %18 = vector.load %arg3[%c0_10, %c0_11] : memref<8x8xf32, #tpu.memory_space<vmem>>, vector<8x8xf32>
    %19 = arith.addf %17, %18 : vector<8x8xf32>
    %cst_12 = arith.constant dense<0xFF800000> : vector<8xf32>
    %20 = vector.multi_reduction <maximumf>, %19, %cst_12 [1] : vector<8x8xf32> to vector<8xf32>
    %21 = vector.shape_cast %20 : vector<8xf32> to vector<8x1xf32>
    %22 = vector.broadcast %21 : vector<8x1xf32> to vector<8x8xf32>
    %23 = arith.subf %19, %22 : vector<8x8xf32>
    %24 = math.exp %23 : vector<8x8xf32>
    %cst_13 = arith.constant dense<0.000000e+00> : vector<8xf32>
    %25 = vector.multi_reduction <add>, %24, %cst_13 [1] : vector<8x8xf32> to vector<8xf32>
    %26 = vector.shape_cast %25 : vector<8xf32> to vector<8x1xf32>
    %27 = tpu.reciprocal %26 {approx = true} : vector<8x1xf32> -> vector<8x1xf32>
    %28 = vector.broadcast %27 : vector<8x1xf32> to vector<8x8xf32>
    %29 = arith.mulf %24, %28 : vector<8x8xf32>
    %30 = vector.shape_cast %1 : vector<8x8x32xf32> to vector<64x32xf32>
    %c0_14 = arith.constant 0 : index
    %c0_15 = arith.constant 0 : index
    %31 = vector.load %arg6[%c0_14, %c0_15] : memref<32x1xf32, #tpu.memory_space<vmem>>, vector<32x1xf32>
    %cst_16 = arith.constant dense<0.000000e+00> : vector<64x1xf32>
    %32 = tpu.matmul %30, %31, %cst_16 {dimension_numbers = #tpu.dot_dimension_numbers<[1], [0], [0], [1], [0, 0, 1, 1], [], []>} : vector<64x32xf32>, vector<32x1xf32>, vector<64x1xf32> -> vector<64x1xf32>
    %33 = vector.shape_cast %32 : vector<64x1xf32> to vector<8x8xf32>
    %c0_17 = arith.constant 0 : index
    %c0_18 = arith.constant 0 : index
    %34 = vector.load %arg7[%c0_17, %c0_18] : memref<1x1xf32, #tpu.memory_space<vmem>>, vector<1x1xf32>
    %35 = vector.broadcast %34 : vector<1x1xf32> to vector<8x8xf32>
    %36 = arith.addf %33, %35 : vector<8x8xf32>
    %c0_19 = arith.constant 0 : index
    %c0_20 = arith.constant 0 : index
    %37 = vector.load %arg8[%c0_19, %c0_20] : memref<8x8xf32, #tpu.memory_space<vmem>>, vector<8x8xf32>
    tpu.vector_store %arg8[%c0_19, %c0_20], %29 {strides = array<i32>} : memref<8x8xf32, #tpu.memory_space<vmem>>, vector<8x8xf32>,
    %38 = arith.mulf %29, %36 : vector<8x8xf32>
    %c0_21 = arith.constant 0 : index
    %c0_22 = arith.constant 0 : index
    %39 = vector.load %arg9[%c0_21, %c0_22] : memref<8x8xf32, #tpu.memory_space<vmem>>, vector<8x8xf32>
    tpu.vector_store %arg9[%c0_21, %c0_22], %38 {strides = array<i32>} : memref<8x8xf32, #tpu.memory_space<vmem>>, vector<8x8xf32>,
    return
  }
  func.func @transform_0(%arg0: i32) -> (i32, i32) {
    %c0_i32 = arith.constant 0 : i32
    %c0_i32_0 = arith.constant 0 : i32
    return %arg0, %c0_i32 : i32, i32
  }
  func.func @transform_1(%arg0: i32) -> (i32, i32, i32) {
    %c0_i32 = arith.constant 0 : i32
    %c0_i32_0 = arith.constant 0 : i32
    %c0_i32_1 = arith.constant 0 : i32
    return %arg0, %c0_i32, %c0_i32_0 : i32, i32, i32
  }
  func.func @transform_2(%arg0: i32) -> (i32, i32) {
    %c0_i32 = arith.constant 0 : i32
    %c0_i32_0 = arith.constant 0 : i32
    return %arg0, %c0_i32 : i32, i32
  }
  func.func @transform_3(%arg0: i32) -> (i32, i32) {
    %c0_i32 = arith.constant 0 : i32
    %c0_i32_0 = arith.constant 0 : i32
    %c0_i32_1 = arith.constant 0 : i32
    return %c0_i32, %c0_i32_0 : i32, i32
  }
  func.func @transform_4(%arg0: i32) -> (i32, i32) {
    %c0_i32 = arith.constant 0 : i32
    %c0_i32_0 = arith.constant 0 : i32
    %c0_i32_1 = arith.constant 0 : i32
    return %c0_i32, %c0_i32_0 : i32, i32
  }
  func.func @transform_5(%arg0: i32) -> (i32, i32) {
    %c0_i32 = arith.constant 0 : i32
    %c0_i32_0 = arith.constant 0 : i32
    %c0_i32_1 = arith.constant 0 : i32
    return %c0_i32, %c0_i32_0 : i32, i32
  }
  func.func @transform_6(%arg0: i32) -> (i32, i32) {
    %c0_i32 = arith.constant 0 : i32
    %c0_i32_0 = arith.constant 0 : i32
    %c0_i32_1 = arith.constant 0 : i32
    return %c0_i32, %c0_i32_0 : i32, i32
  }
  func.func @transform_7(%arg0: i32) -> (i32, i32) {
    %c0_i32 = arith.constant 0 : i32
    %c0_i32_0 = arith.constant 0 : i32
    return %arg0, %c0_i32 : i32, i32
  }
  func.func @transform_8(%arg0: i32) -> (i32, i32) {
    %c0_i32 = arith.constant 0 : i32
    %c0_i32_0 = arith.constant 0 : i32
    return %arg0, %c0_i32 : i32, i32
  }
}

module attributes {stable_mosaic.version = 11 : i64} {
  func.func @pointer_kernel(%arg0: i32, %arg1: memref<8x32xf32, #tpu.memory_space<vmem>>, %arg2: memref<8x8x32xf32, #tpu.memory_space<vmem>>, %arg3: memref<8x8xf32, #tpu.memory_space<vmem>>, %arg4: memref<32x33xf32, #tpu.memory_space<vmem>>, %arg5: memref<1x33xf32, #tpu.memory_space<vmem>>, %arg6: memref<1x32xf32, #tpu.memory_space<vmem>>, %arg7: memref<1x1xf32, #tpu.memory_space<vmem>>, %arg8: memref<8x8xf32, #tpu.memory_space<vmem>>, %arg9: memref<8x8xf32, #tpu.memory_space<vmem>>) attributes {dimension_semantics = [#tpu.dimension_semantics<parallel>], iteration_bounds = array<i64: 2>, scalar_prefetch = 0 : i64, scratch_operands = 0 : i64, tpu.core_type = #tpu.core_type<tc>, window_params = [{transform_indices = @transform_0, window_bounds = array<i64: 8, 32>}, {transform_indices = @transform_1, window_bounds = array<i64: 8, 8, 32>}, {transform_indices = @transform_2, window_bounds = array<i64: 8, 8>}, {pipeline_mode = #tpu.pipeline_mode<synchronous>, transform_indices = @transform_3, window_bounds = array<i64: 32, 33>}, {pipeline_mode = #tpu.pipeline_mode<synchronous>, transform_indices = @transform_4, window_bounds = array<i64: 1, 33>}, {pipeline_mode = #tpu.pipeline_mode<synchronous>, transform_indices = @transform_5, window_bounds = array<i64: 1, 32>}, {pipeline_mode = #tpu.pipeline_mode<synchronous>, transform_indices = @transform_6, window_bounds = array<i64: 1, 1>}, {transform_indices = @transform_7, window_bounds = array<i64: 8, 8>}, {transform_indices = @transform_8, window_bounds = array<i64: 8, 8>}]} {
    %c0 = arith.constant 0 : index
    %c0_0 = arith.constant 0 : index
    %0 = vector.load %arg1[%c0, %c0_0] : memref<8x32xf32, #tpu.memory_space<vmem>>, vector<8x32xf32>
    %c0_1 = arith.constant 0 : index
    %c0_2 = arith.constant 0 : index
    %c0_3 = arith.constant 0 : index
    %1 = vector.load %arg2[%c0_1, %c0_2, %c0_3] : memref<8x8x32xf32, #tpu.memory_space<vmem>>, vector<8x8x32xf32>
    %c0_4 = arith.constant 0 : index
    %c0_5 = arith.constant 0 : index
    %2 = vector.load %arg4[%c0_4, %c0_5] : memref<32x33xf32, #tpu.memory_space<vmem>>, vector<32x33xf32>
    %cst = arith.constant dense<0.000000e+00> : vector<8x33xf32>
    %3 = tpu.matmul %0, %2, %cst {dimension_numbers = #tpu.dot_dimension_numbers<[1], [0], [0], [1], [0, 0, 1, 1], [], []>} : vector<8x32xf32>, vector<32x33xf32>, vector<8x33xf32> -> vector<8x33xf32>
    %c0_6 = arith.constant 0 : index
    %c0_7 = arith.constant 0 : index
    %4 = vector.load %arg5[%c0_6, %c0_7] : memref<1x33xf32, #tpu.memory_space<vmem>>, vector<1x33xf32>
    %5 = vector.broadcast %4 : vector<1x33xf32> to vector<8x33xf32>
    %6 = arith.addf %3, %5 : vector<8x33xf32>
    %7 = vector.extract_strided_slice %6 {offsets = [0, 0], sizes = [8, 32], strides = [1, 1]} : vector<8x33xf32> to vector<8x32xf32>
    %8 = vector.extract_strided_slice %6 {offsets = [0, 32], sizes = [8, 1], strides = [1, 1]} : vector<8x33xf32> to vector<8x1xf32>
    %9 = vector.shape_cast %7 : vector<8x32xf32> to vector<8x1x32xf32>
    %10 = vector.broadcast %9 : vector<8x1x32xf32> to vector<8x8x32xf32>
    %11 = arith.mulf %10, %1 : vector<8x8x32xf32>
    %cst_8 = arith.constant dense<0.000000e+00> : vector<8x8xf32>
    %12 = vector.multi_reduction <add>, %11, %cst_8 [2] : vector<8x8x32xf32> to vector<8x8xf32>
    %13 = vector.broadcast %8 : vector<8x1xf32> to vector<8x8xf32>
    %14 = arith.addf %12, %13 : vector<8x8xf32>
    %15 = math.tanh %14 : vector<8x8xf32>
    %cst_9 = arith.constant 1.000000e+01 : f32
    %16 = vector.broadcast %cst_9 : f32 to vector<8x8xf32>
    %17 = arith.mulf %16, %15 : vector<8x8xf32>
    %c0_10 = arith.constant 0 : index
    %c0_11 = arith.constant 0 : index
    %18 = vector.load %arg3[%c0_10, %c0_11] : memref<8x8xf32, #tpu.memory_space<vmem>>, vector<8x8xf32>
    %19 = arith.addf %17, %18 : vector<8x8xf32>
    %cst_12 = arith.constant dense<0xFF800000> : vector<8xf32>
    %20 = vector.multi_reduction <maximumf>, %19, %cst_12 [1] : vector<8x8xf32> to vector<8xf32>
    %21 = vector.shape_cast %20 : vector<8xf32> to vector<8x1xf32>
    %22 = vector.broadcast %21 : vector<8x1xf32> to vector<8x8xf32>
    %23 = arith.subf %19, %22 : vector<8x8xf32>
    %24 = math.exp %23 : vector<8x8xf32>
    %cst_13 = arith.constant dense<0.000000e+00> : vector<8xf32>
    %25 = vector.multi_reduction <add>, %24, %cst_13 [1] : vector<8x8xf32> to vector<8xf32>
    %26 = vector.shape_cast %25 : vector<8xf32> to vector<8x1xf32>
    %27 = tpu.reciprocal %26 {approx = true} : vector<8x1xf32> -> vector<8x1xf32>
    %28 = vector.broadcast %27 : vector<8x1xf32> to vector<8x8xf32>
    %29 = arith.mulf %24, %28 : vector<8x8xf32>
    %c0_14 = arith.constant 0 : index
    %c0_15 = arith.constant 0 : index
    %30 = vector.load %arg6[%c0_14, %c0_15] : memref<1x32xf32, #tpu.memory_space<vmem>>, vector<1x32xf32>
    %31 = vector.shape_cast %30 : vector<1x32xf32> to vector<1x1x32xf32>
    %32 = vector.broadcast %31 : vector<1x1x32xf32> to vector<8x8x32xf32>
    %33 = arith.mulf %32, %1 : vector<8x8x32xf32>
    %cst_16 = arith.constant dense<0.000000e+00> : vector<8x8xf32>
    %34 = vector.multi_reduction <add>, %33, %cst_16 [2] : vector<8x8x32xf32> to vector<8x8xf32>
    %c0_17 = arith.constant 0 : index
    %c0_18 = arith.constant 0 : index
    %35 = vector.load %arg7[%c0_17, %c0_18] : memref<1x1xf32, #tpu.memory_space<vmem>>, vector<1x1xf32>
    %36 = vector.broadcast %35 : vector<1x1xf32> to vector<8x8xf32>
    %37 = arith.addf %34, %36 : vector<8x8xf32>
    %c0_19 = arith.constant 0 : index
    %c0_20 = arith.constant 0 : index
    %38 = vector.load %arg8[%c0_19, %c0_20] : memref<8x8xf32, #tpu.memory_space<vmem>>, vector<8x8xf32>
    tpu.vector_store %arg8[%c0_19, %c0_20], %29 {strides = array<i32>} : memref<8x8xf32, #tpu.memory_space<vmem>>, vector<8x8xf32>,
    %39 = arith.mulf %29, %37 : vector<8x8xf32>
    %c0_21 = arith.constant 0 : index
    %c0_22 = arith.constant 0 : index
    %40 = vector.load %arg9[%c0_21, %c0_22] : memref<8x8xf32, #tpu.memory_space<vmem>>, vector<8x8xf32>
    tpu.vector_store %arg9[%c0_21, %c0_22], %39 {strides = array<i32>} : memref<8x8xf32, #tpu.memory_space<vmem>>, vector<8x8xf32>,
    return
  }
  func.func @transform_0(%arg0: i32) -> (i32, i32) {
    %c0_i32 = arith.constant 0 : i32
    %c0_i32_0 = arith.constant 0 : i32
    return %arg0, %c0_i32 : i32, i32
  }
  func.func @transform_1(%arg0: i32) -> (i32, i32, i32) {
    %c0_i32 = arith.constant 0 : i32
    %c0_i32_0 = arith.constant 0 : i32
    %c0_i32_1 = arith.constant 0 : i32
    return %arg0, %c0_i32, %c0_i32_0 : i32, i32, i32
  }
  func.func @transform_2(%arg0: i32) -> (i32, i32) {
    %c0_i32 = arith.constant 0 : i32
    %c0_i32_0 = arith.constant 0 : i32
    return %arg0, %c0_i32 : i32, i32
  }
  func.func @transform_3(%arg0: i32) -> (i32, i32) {
    %c0_i32 = arith.constant 0 : i32
    %c0_i32_0 = arith.constant 0 : i32
    %c0_i32_1 = arith.constant 0 : i32
    return %c0_i32, %c0_i32_0 : i32, i32
  }
  func.func @transform_4(%arg0: i32) -> (i32, i32) {
    %c0_i32 = arith.constant 0 : i32
    %c0_i32_0 = arith.constant 0 : i32
    %c0_i32_1 = arith.constant 0 : i32
    return %c0_i32, %c0_i32_0 : i32, i32
  }
  func.func @transform_5(%arg0: i32) -> (i32, i32) {
    %c0_i32 = arith.constant 0 : i32
    %c0_i32_0 = arith.constant 0 : i32
    %c0_i32_1 = arith.constant 0 : i32
    return %c0_i32, %c0_i32_0 : i32, i32
  }
  func.func @transform_6(%arg0: i32) -> (i32, i32) {
    %c0_i32 = arith.constant 0 : i32
    %c0_i32_0 = arith.constant 0 : i32
    %c0_i32_1 = arith.constant 0 : i32
    return %c0_i32, %c0_i32_0 : i32, i32
  }
  func.func @transform_7(%arg0: i32) -> (i32, i32) {
    %c0_i32 = arith.constant 0 : i32
    %c0_i32_0 = arith.constant 0 : i32
    return %arg0, %c0_i32 : i32, i32
  }
  func.func @transform_8(%arg0: i32) -> (i32, i32) {
    %c0_i32 = arith.constant 0 : i32
    %c0_i32_0 = arith.constant 0 : i32
    return %arg0, %c0_i32 : i32, i32
  }
}

</mosaic_0001>

<llo_original>
// kernel: tpu_custom_call.1
$region0: #{tpu_custom_call.1}
  #allocation0 [shape = 'u32[]', space=smem, size = 0x4, offset = 0x4, fixed_abs, tag = 'smem constant byte address 0x4 - core index']
  #allocation1 [shape = 'u32[144,128]{1,0:T(1,128)}', space=vmem, size = 0x12000, scoped, tag = 'internal scratch']
  #allocation2 [shape = 'f32[1,1]{1,0:T(1,128)S(1)}', space=vmem, size = 0x200, scoped, tag = 'scoped memory for tpu_custom_call.1']
  %s0 = inlined_call_operand.vmem [shape: f32[16,32], index: 0, kind: input, shape index: {}]
  %s1 = inlined_call_operand.hbm [shape: f32[16,8,32], index: 1, kind: input, shape index: {}]
  %s2 = inlined_call_operand.vmem [shape: f32[16,8], index: 2, kind: input, shape index: {}]
  %s3 = inlined_call_operand.vmem [shape: f32[32,33], index: 3, kind: input, shape index: {}]
  %s4 = inlined_call_operand.vmem [shape: f32[1,33], index: 4, kind: input, shape index: {}]
  %s5 = inlined_call_operand.vmem [shape: f32[32,1], index: 5, kind: input, shape index: {}]
  %s6 = inlined_call_operand.<no memory space> [shape: f32[1,1], index: 6, kind: input, shape index: {}]
  %s7 = inlined_call_operand.vmem [shape: f32[16,8], index: 7, kind: output, shape index: {0}]
  %s8 = inlined_call_operand.vmem [shape: f32[16,8], index: 8, kind: output, shape index: {1}]
  %9 = xla_tuple %s7, %s8
  %s10 = sld [smem:[#allocation0]]
  $region73: #{tpu_custom_call.1} parent=0
    _
  %s12 = ssub.s32 1, %s10
  %s13 = scalar_select 0, %s12, %s10
  %v14 = vstv %s6
  %15 = vst [vmem:[#allocation2] sm:$0x1] %v14
  $region1: #{tpu_custom_call.1} parent=0
    #allocation3 [shape = 'u8[65536]{0}', space=vmem, size = 0x10000, scoped, tag = 'input window, operand 1']
    #allocation4 [shape = 's32[2]{0}', space=sflag, size = 0x8, scoped, tag = 'scoped memory for tpu_custom_call.1']
    %16 = vsyncpa [#allocation4], 0
    %s17 = scalar_lea.sflag [#allocation4], 1
    %18 = vsyncpa %s17, 0
    loop: start=0, step=1, limit=4
    $region2: #{tpu_custom_call.1} parent=1 // loop_pre_header
      _
    $region3: #{tpu_custom_call.1} parent=1 // loop_header
      %s20 = sphi 0, %s24
      %p21 = scmp.ge.s32.totalorder %s20, 4
      %s30 = sphi 0, %s32
      %s33 = sphi 0, %s30
      %s34 = sphi 0, %s33
      %s50 = sphi 0, %s34
      %s56 = sphi 0, %s58
      %s59 = sphi 0, %s56
      %s60 = sphi 0, %s59
      %s76 = sphi 0, %s60
      %s82 = sphi 0, %s84
      %s85 = sphi 0, %s82
      %s86 = sphi 0, %s85
      %s102 = sphi 0, %s86
      %s106 = sphi 0, %s106
      %s108 = sphi 0, %s106
      %s109 = sphi 0, %s108
      %s123 = sphi 0, %s109
      %s127 = sphi 0, %s127
      %s129 = sphi 0, %s127
      %s130 = sphi 0, %s129
      %s144 = sphi 0, %s130
      %s148 = sphi 0, %s148
      %s150 = sphi 0, %s148
      %s151 = sphi 0, %s150
      %s165 = sphi 0, %s151
      %s169 = sphi 0, %s169
      %s171 = sphi 0, %s169
      %s172 = sphi 0, %s171
      %s186 = sphi 0, %s172
      %s192 = sphi 0, %s194
      %s195 = sphi 0, %s192
      %s196 = sphi 0, %s195
      %s212 = sphi 0, %s196
      %s218 = sphi 0, %s220
      %s221 = sphi 0, %s218
      %s222 = sphi 0, %s221
      %s238 = sphi 0, %s222
    $region4: #{tpu_custom_call.1} parent=1 // loop_header_branch
      %23 = sbr.rel (%p21) target = $region8
    $region5: #{tpu_custom_call.1} parent=1 // loop_body
      %s25 = ssub.s32 %s20, 1
      %s26 = ssub.s32 %s20, 2
      %s27 = sadd.s32 %s20, 1
      %s28 = ssub.s32 %s20, %s27
      %p29 = scmp.eq.s32.totalorder %s28, 0
      %s31 = sadd.s32 %s30, 1
      %s32 = scalar_select %p29, %s30, %s31
      %p35 = pneg %p29
      %p36 = scmp.eq.s32.totalorder %s20, 1
      %p37 = por %p35, %p36
      %p38 = scmp.ne.s32.totalorder %s30, %s33
      %p39 = scmp.eq.s32.totalorder %s20, 0
      %p40 = por %p38, %p39
      %p41 = scmp.ne.s32.totalorder %s30, %s33
      %p42 = scmp.eq.s32.totalorder %s25, 1
      %p43 = por %p41, %p42
      %p44 = scmp.ne.s32.totalorder %s33, %s34
      %p45 = scmp.eq.s32.totalorder %s25, 0
      %p46 = por %p44, %p45
      %p47 = scmp.ne.s32.totalorder %s33, %s34
      %p48 = scmp.eq.s32.totalorder %s26, 1
      %p49 = por %p47, %p48
      %p51 = scmp.ne.s32.totalorder %s34, %s50
      %p52 = scmp.eq.s32.totalorder %s26, 0
      %p53 = por %p51, %p52
      %s54 = ssub.s32 %s20, %s27
      %p55 = scmp.eq.s32.totalorder %s54, 0
      %s57 = sadd.s32 %s56, 1
      %s58 = scalar_select %p55, %s56, %s57
      %p61 = pneg %p55
      %p62 = scmp.eq.s32.totalorder %s20, 1
      %p63 = por %p61, %p62
      %p64 = scmp.ne.s32.totalorder %s56, %s59
      %p65 = scmp.eq.s32.totalorder %s20, 0
      %p66 = por %p64, %p65
      %p67 = scmp.ne.s32.totalorder %s56, %s59
      %p68 = scmp.eq.s32.totalorder %s25, 1
      %p69 = por %p67, %p68
      %p70 = scmp.ne.s32.totalorder %s59, %s60
      %p71 = scmp.eq.s32.totalorder %s25, 0
      %p72 = por %p70, %p71
      %p73 = scmp.ne.s32.totalorder %s59, %s60
      %p74 = scmp.eq.s32.totalorder %s26, 1
      %p75 = por %p73, %p74
      %p77 = scmp.ne.s32.totalorder %s60, %s76
      %p78 = scmp.eq.s32.totalorder %s26, 0
      %p79 = por %p77, %p78
      %s80 = ssub.s32 %s20, %s27
      %p81 = scmp.eq.s32.totalorder %s80, 0
      %s83 = sadd.s32 %s82, 1
      %s84 = scalar_select %p81, %s82, %s83
      %p87 = pneg %p81
      %p88 = scmp.eq.s32.totalorder %s20, 1
      %p89 = por %p87, %p88
      %p90 = scmp.ne.s32.totalorder %s82, %s85
      %p91 = scmp.eq.s32.totalorder %s20, 0
      %p92 = por %p90, %p91
      %p93 = scmp.ne.s32.totalorder %s82, %s85
      %p94 = scmp.eq.s32.totalorder %s25, 1
      %p95 = por %p93, %p94
      %p96 = scmp.ne.s32.totalorder %s85, %s86
      %p97 = scmp.eq.s32.totalorder %s25, 0
      %p98 = por %p96, %p97
      %p99 = scmp.ne.s32.totalorder %s85, %s86
      %p100 = scmp.eq.s32.totalorder %s26, 1
      %p101 = por %p99, %p100
      %p103 = scmp.ne.s32.totalorder %s86, %s102
      %p104 = scmp.eq.s32.totalorder %s26, 0
      %p105 = por %p103, %p104
      %s107 = sadd.s32 %s106, 1
      %p110 = scmp.eq.s32.totalorder %s20, 1
      %p111 = scmp.ne.s32.totalorder %s106, %s108
      %p112 = scmp.eq.s32.totalorder %s20, 0
      %p113 = por %p111, %p112
      %p114 = scmp.ne.s32.totalorder %s106, %s108
      %p115 = scmp.eq.s32.totalorder %s25, 1
      %p116 = por %p114, %p115
      %p117 = scmp.ne.s32.totalorder %s108, %s109
      %p118 = scmp.eq.s32.totalorder %s25, 0
      %p119 = por %p117, %p118
      %p120 = scmp.ne.s32.totalorder %s108, %s109
      %p121 = scmp.eq.s32.totalorder %s26, 1
      %p122 = por %p120, %p121
      %p124 = scmp.ne.s32.totalorder %s109, %s123
      %p125 = scmp.eq.s32.totalorder %s26, 0
      %p126 = por %p124, %p125
      %s128 = sadd.s32 %s127, 1
      %p131 = scmp.eq.s32.totalorder %s20, 1
      %p132 = scmp.ne.s32.totalorder %s127, %s129
      %p133 = scmp.eq.s32.totalorder %s20, 0
      %p134 = por %p132, %p133
      %p135 = scmp.ne.s32.totalorder %s127, %s129
      %p136 = scmp.eq.s32.totalorder %s25, 1
      %p137 = por %p135, %p136
      %p138 = scmp.ne.s32.totalorder %s129, %s130
      %p139 = scmp.eq.s32.totalorder %s25, 0
      %p140 = por %p138, %p139
      %p141 = scmp.ne.s32.totalorder %s129, %s130
      %p142 = scmp.eq.s32.totalorder %s26, 1
      %p143 = por %p141, %p142
      %p145 = scmp.ne.s32.totalorder %s130, %s144
      %p146 = scmp.eq.s32.totalorder %s26, 0
      %p147 = por %p145, %p146
      %s149 = sadd.s32 %s148, 1
      %p152 = scmp.eq.s32.totalorder %s20, 1
      %p153 = scmp.ne.s32.totalorder %s148, %s150
      %p154 = scmp.eq.s32.totalorder %s20, 0
      %p155 = por %p153, %p154
      %p156 = scmp.ne.s32.totalorder %s148, %s150
      %p157 = scmp.eq.s32.totalorder %s25, 1
      %p158 = por %p156, %p157
      %p159 = scmp.ne.s32.totalorder %s150, %s151
      %p160 = scmp.eq.s32.totalorder %s25, 0
      %p161 = por %p159, %p160
      %p162 = scmp.ne.s32.totalorder %s150, %s151
      %p163 = scmp.eq.s32.totalorder %s26, 1
      %p164 = por %p162, %p163
      %p166 = scmp.ne.s32.totalorder %s151, %s165
      %p167 = scmp.eq.s32.totalorder %s26, 0
      %p168 = por %p166, %p167
      %s170 = sadd.s32 %s169, 1
      %p173 = scmp.eq.s32.totalorder %s20, 1
      %p174 = scmp.ne.s32.totalorder %s169, %s171
      %p175 = scmp.eq.s32.totalorder %s20, 0
      %p176 = por %p174, %p175
      %p177 = scmp.ne.s32.totalorder %s169, %s171
      %p178 = scmp.eq.s32.totalorder %s25, 1
      %p179 = por %p177, %p178
      %p180 = scmp.ne.s32.totalorder %s171, %s172
      %p181 = scmp.eq.s32.totalorder %s25, 0
      %p182 = por %p180, %p181
      %p183 = scmp.ne.s32.totalorder %s171, %s172
      %p184 = scmp.eq.s32.totalorder %s26, 1
      %p185 = por %p183, %p184
      %p187 = scmp.ne.s32.totalorder %s172, %s186
      %p188 = scmp.eq.s32.totalorder %s26, 0
      %p189 = por %p187, %p188
      %s190 = ssub.s32 %s20, %s27
      %p191 = scmp.eq.s32.totalorder %s190, 0
      %s193 = sadd.s32 %s192, 1
      %s194 = scalar_select %p191, %s192, %s193
      %p197 = pneg %p191
      %p198 = scmp.eq.s32.totalorder %s20, 1
      %p199 = por %p197, %p198
      %p200 = scmp.ne.s32.totalorder %s192, %s195
      %p201 = scmp.eq.s32.totalorder %s20, 0
      %p202 = por %p200, %p201
      %p203 = scmp.ne.s32.totalorder %s192, %s195
      %p204 = scmp.eq.s32.totalorder %s25, 1
      %p205 = por %p203, %p204
      %p206 = scmp.ne.s32.totalorder %s195, %s196
      %p207 = scmp.eq.s32.totalorder %s25, 0
      %p208 = por %p206, %p207
      %p209 = scmp.ne.s32.totalorder %s195, %s196
      %p210 = scmp.eq.s32.totalorder %s26, 1
      %p211 = por %p209, %p210
      %p213 = scmp.ne.s32.totalorder %s196, %s212
      %p214 = scmp.eq.s32.totalorder %s26, 0
      %p215 = por %p213, %p214
      %s216 = ssub.s32 %s20, %s27
      %p217 = scmp.eq.s32.totalorder %s216, 0
      %s219 = sadd.s32 %s218, 1
      %s220 = scalar_select %p217, %s218, %s219
      %p223 = pneg %p217
      %p224 = scmp.eq.s32.totalorder %s20, 1
      %p225 = por %p223, %p224
      %p226 = scmp.ne.s32.totalorder %s218, %s221
      %p227 = scmp.eq.s32.totalorder %s20, 0
      %p228 = por %p226, %p227
      %p229 = scmp.ne.s32.totalorder %s218, %s221
      %p230 = scmp.eq.s32.totalorder %s25, 1
      %p231 = por %p229, %p230
      %p232 = scmp.ne.s32.totalorder %s221, %s222
      %p233 = scmp.eq.s32.totalorder %s25, 0
      %p234 = por %p232, %p233
      %p235 = scmp.ne.s32.totalorder %s221, %s222
      %p236 = scmp.eq.s32.totalorder %s26, 1
      %p237 = por %p235, %p236
      %p239 = scmp.ne.s32.totalorder %s222, %s238
      %p240 = scmp.eq.s32.totalorder %s26, 0
      %p241 = por %p239, %p240
      %p242 = scmp.le.s32.totalorder 1, %s20
      %p243 = scmp.lt.s32.totalorder %s20, 3
      %p244 = pnand %p242, %p243
      %p245 = pneg %p244
      // Predicated region
      $region9: #{tpu_custom_call.1} parent=5 // pred_check
        _
      $region10: #{tpu_custom_call.1} parent=5 // pred_check_branch
        %247 = sbr.rel (%p244) target = $region12
      $region11: #{tpu_custom_call.1} parent=5 // pred_region
        %s248 = ssub.s32 %s20, 1
        // Predicated region
        $region13: #{tpu_custom_call.1} parent=11 // pred_check
          %p249 = pneg %p119
        $region14: #{tpu_custom_call.1} parent=11 // pred_check_branch
          %251 = sbr.rel (%p249) target = $region16
        $region15: #{tpu_custom_call.1} parent=11 // pred_region
          _
        $region16: #{tpu_custom_call.1} parent=11 // pred_fallthru
          _
        // Predicated region
        $region17: #{tpu_custom_call.1} parent=11 // pred_check
          %p252 = pneg %p140
        $region18: #{tpu_custom_call.1} parent=11 // pred_check_branch
          %254 = sbr.rel (%p252) target = $region20
        $region19: #{tpu_custom_call.1} parent=11 // pred_region
          _
        $region20: #{tpu_custom_call.1} parent=11 // pred_fallthru
          _
        // Predicated region
        $region21: #{tpu_custom_call.1} parent=11 // pred_check
          %p255 = pneg %p161
        $region22: #{tpu_custom_call.1} parent=11 // pred_check_branch
          %257 = sbr.rel (%p255) target = $region24
        $region23: #{tpu_custom_call.1} parent=11 // pred_region
          _
        $region24: #{tpu_custom_call.1} parent=11 // pred_fallthru
          _
        // Predicated region
        $region25: #{tpu_custom_call.1} parent=11 // pred_check
          %p258 = pneg %p182
        $region26: #{tpu_custom_call.1} parent=11 // pred_check_branch
          %260 = sbr.rel (%p258) target = $region28
        $region27: #{tpu_custom_call.1} parent=11 // pred_region
          _
        $region28: #{tpu_custom_call.1} parent=11 // pred_fallthru
          _
      $region12: #{tpu_custom_call.1} parent=5 // pred_fallthru
        _
      %p261 = scmp.lt.s32.totalorder %s20, 2
      // Predicated region
      $region29: #{tpu_custom_call.1} parent=5 // pred_check
        %p262 = pneg %p261
      $region30: #{tpu_custom_call.1} parent=5 // pred_check_branch
        %264 = sbr.rel (%p262) target = $region32
      $region31: #{tpu_custom_call.1} parent=5 // pred_region
        // Predicated region
        $region33: #{tpu_custom_call.1} parent=31 // pred_check
          %p265 = pneg %p40
        $region34: #{tpu_custom_call.1} parent=31 // pred_check_branch
          %267 = sbr.rel (%p265) target = $region36
        $region35: #{tpu_custom_call.1} parent=31 // pred_region
          %p268 = scmp.lt.s32.totalorder %s20, 1
          %s269 = scalar_select %p268, %s20, 1
          %s270 = smul.addr %s269, 8
          %s271 = scalar_lea.vmem %s0, %s270
        $region36: #{tpu_custom_call.1} parent=31 // pred_fallthru
          _
        // Predicated region
        $region37: #{tpu_custom_call.1} parent=31 // pred_check
          %p272 = pneg %p66
        $region38: #{tpu_custom_call.1} parent=31 // pred_check_branch
          %274 = sbr.rel (%p272) target = $region40
        $region39: #{tpu_custom_call.1} parent=31 // pred_region
          %s275 = sand.u32 %s56, 1
          %s276 = scalar_lea.sflag [#allocation4], %s275
          %s277 = sand.u32 %s56, 1
          %s278 = smul.addr %s277, 64
          %s279 = scalar_lea.vmem [#allocation3], %s278
          %s280 = smul.u32 8, %s20
          %s282 = ssub.s32 1024, 1024
          %283 = vsyncadd %s276, %s282
          %s284 = smul.addr %s280, 128
          %s285 = scalar_lea.hbm %s1, %s284
          %s286 = sshll.u32 %s279, 4
          %s287 = int_to_ptr.vmem [resolvable:$true] %s286
          %292 = dma.hbm_to_vmem [thread:$0]  %s285, 1024, %s287, %s276, 128, 128, 8
        $region40: #{tpu_custom_call.1} parent=31 // pred_fallthru
          _
        // Predicated region
        $region41: #{tpu_custom_call.1} parent=31 // pred_check
          %p293 = pneg %p92
        $region42: #{tpu_custom_call.1} parent=31 // pred_check_branch
          %295 = sbr.rel (%p293) target = $region44
        $region43: #{tpu_custom_call.1} parent=31 // pred_region
          %p296 = scmp.lt.s32.totalorder %s20, 1
          %s297 = scalar_select %p296, %s20, 1
          %s298 = smul.addr %s297, 8
          %s299 = scalar_lea.vmem %s2, %s298
        $region44: #{tpu_custom_call.1} parent=31 // pred_fallthru
          _
      $region32: #{tpu_custom_call.1} parent=5 // pred_fallthru
        _
      %p300 = scmp.le.s32.totalorder 1, %s20
      %p301 = scmp.lt.s32.totalorder %s20, 3
      %p302 = pnand %p300, %p301
      %p303 = pneg %p302
      // Predicated region
      $region45: #{tpu_custom_call.1} parent=5 // pred_check
        _
      $region46: #{tpu_custom_call.1} parent=5 // pred_check_branch
        %305 = sbr.rel (%p302) target = $region48
      $region47: #{tpu_custom_call.1} parent=5 // pred_region
        %s306 = ssub.s32 %s20, 1
        %s307 = sand.u32 %s59, 1
        %s308 = scalar_lea.sflag [#allocation4], %s307
        %s309 = sand.u32 %s59, 1
        %s310 = smul.addr %s309, 64
        %s311 = scalar_lea.vmem [#allocation3], %s310
        // Predicated region
        $region49: #{tpu_custom_call.1} parent=47 // pred_check
          %p312 = pneg %p72
        $region50: #{tpu_custom_call.1} parent=47 // pred_check_branch
          %314 = sbr.rel (%p312) target = $region52
        $region51: #{tpu_custom_call.1} parent=47 // pred_region
          %315 = dma.done %s308, 1024
        $region52: #{tpu_custom_call.1} parent=47 // pred_fallthru
          _
        %p316 = scmp.lt.s32.totalorder %s25, 1
        %s317 = scalar_select %p316, %s25, 1
        %s318 = smul.addr %s317, 8
        %s319 = scalar_lea.vmem %s0, %s318
        %p320 = pneg %p46
        %p321 = pneg %p43
        %s322 = sand.u32 %s59, 1
        %s323 = scalar_lea.sflag [#allocation4], %s322
        %s324 = sand.u32 %s59, 1
        %s325 = smul.addr %s324, 64
        %s326 = scalar_lea.vmem [#allocation3], %s325
        %p327 = pneg %p72
        %p328 = pneg %p69
        %p329 = scmp.lt.s32.totalorder %s25, 1
        %s330 = scalar_select %p329, %s25, 1
        %s331 = smul.addr %s330, 8
        %s332 = scalar_lea.vmem %s2, %s331
        %p333 = pneg %p98
        %p334 = pneg %p95
        %p335 = pneg %p119
        %p336 = pneg %p116
        %p337 = pneg %p140
        %p338 = pneg %p137
        %p339 = pneg %p161
        %p340 = pneg %p158
        %p341 = pneg %p182
        %p342 = pneg %p179
        %p343 = pneg %p208
        %p344 = pneg %p205
        %p345 = scmp.lt.s32.totalorder %s25, 1
        %s346 = scalar_select %p345, %s25, 1
        %s347 = smul.addr %s346, 8
        %s348 = scalar_lea.vmem %s7, %s347
        %p349 = pneg %p234
        %p350 = pneg %p231
        %p351 = scmp.lt.s32.totalorder %s25, 1
        %s352 = scalar_select %p351, %s25, 1
        %s353 = smul.addr %s352, 8
        %s354 = scalar_lea.vmem %s8, %s353
        %p355 = scmp.lt.s32.totalorder %s25, 1
        %s356 = scalar_select %p355, %s25, 1
        %s357 = smul.addr %s356, 8
        %s358 = scalar_lea.vmem %s0, %s357
        %s359 = smul.u32 8, %s25
        %p360 = scmp.lt.s32.totalorder %s25, 1
        %s361 = scalar_select %p360, %s25, 1
        %s362 = smul.addr %s361, 8
        %s363 = scalar_lea.vmem %s2, %s362
        %p364 = scmp.lt.s32.totalorder %s25, 1
        %s365 = scalar_select %p364, %s25, 1
        %s366 = smul.addr %s365, 8
        %s367 = scalar_lea.vmem %s7, %s366
        %p368 = scmp.lt.s32.totalorder %s25, 1
        %s369 = scalar_select %p368, %s25, 1
        %s370 = smul.addr %s369, 8
        %s371 = scalar_lea.vmem %s8, %s370
        %v372 = vld [vmem:[%s358] sm:$0xff]
        %v373 = vld [vmem:[%s311] sm:$0xff]
        %v374 = vld [vmem:[%s311 + $0x8] sm:$0xff]
        %v375 = vld [vmem:[%s311 + $0x10] sm:$0xff]
        %v376 = vld [vmem:[%s311 + $0x18] sm:$0xff]
        %v377 = vld [vmem:[%s311 + $0x20] sm:$0xff]
        %v378 = vld [vmem:[%s311 + $0x28] sm:$0xff]
        %v379 = vld [vmem:[%s311 + $0x30] sm:$0xff]
        %v380 = vld [vmem:[%s311 + $0x38] sm:$0xff]
        %v381 = vld [vmem:[%s3] sm:$0xff]
        %v382 = vld [vmem:[%s3 + $0x8] sm:$0xff]
        %v383 = vld [vmem:[%s3 + $0x10] sm:$0xff]
        %v384 = vld [vmem:[%s3 + $0x18] sm:$0xff]
        %v385 = vld [vmem:[%s4] sm:$0x1]
        %v387 = vlaneseq
        %v388 = vshrl.u32 %v387, 7
        %v389 = vsub.s32 0, %v388
        %v390 = vrot.slane %v385, %v389
        %vm392 = vcmask 261120
        %v394 = vsel %vm392, %v372, 0
        %396 = vmatprep.subr.mxu0 0.0
        %397 = vmatpush1.msra.mxu0 0.0
        %398 = vmatprep.subr.mxu0 0.0
        %399 = vmatpush1.msra.mxu0 0.0
        %400 = vmatprep.subr.mxu0 0.0
        %401 = vmatpush1.msra.mxu0 0.0
        %402 = vmatprep.subr.mxu0 0.0
        %403 = vmatpush1.msra.mxu0 0.0
        %404 = vmatprep.subr.mxu0 0.0
        %405 = vmatpush1.msra.mxu0 0.0
        %406 = vmatprep.subr.mxu0 0.0
        %407 = vmatpush1.msra.mxu0 0.0
        %408 = vmatprep.subr.mxu0 0.0
        %409 = vmatpush1.msra.mxu0 0.0
        %410 = vmatprep.subr.mxu0 0.0
        %411 = vmatpush1.msra.mxu0 0.0
        %412 = vmatprep.subr.mxu0 0.0
        %413 = vmatpush1.msra.mxu0 0.0
        %414 = vmatprep.subr.mxu0 0.0
        %415 = vmatpush1.msra.mxu0 0.0
        %416 = vmatprep.subr.mxu0 0.0
        %417 = vmatpush1.msra.mxu0 0.0
        %418 = vmatprep.subr.mxu0 0.0
        %419 = vmatpush1.msra.mxu0 0.0
        %420 = vmatprep.subr.mxu0 0.0
        %421 = vmatpush1.msra.mxu0 %v384
        %422 = vmatprep.subr.mxu0 0.0
        %423 = vmatpush1.msra.mxu0 %v383
        %424 = vmatprep.subr.mxu0 0.0
        %425 = vmatpush1.msra.mxu0 %v382
        %426 = vmatprep.subr.mxu0 0.0
        %427 = vmatpush1.msra.mxu0 %v381
        %428 = vmatprep.subr.mxu0 0.0
        %429 = vmatpush2.msra.mxu0 0.0
        %430 = vmatprep.subr.mxu0 0.0
        %431 = vmatpush2.msra.mxu0 0.0
        %432 = vmatprep.subr.mxu0 0.0
        %433 = vmatpush2.msra.mxu0 0.0
        %434 = vmatprep.subr.mxu0 0.0
        %435 = vmatpush2.msra.mxu0 0.0
        %436 = vmatprep.subr.mxu0 0.0
        %437 = vmatpush2.msra.mxu0 0.0
        %438 = vmatprep.subr.mxu0 0.0
        %439 = vmatpush2.msra.mxu0 0.0
        %440 = vmatprep.subr.mxu0 0.0
        %441 = vmatpush2.msra.mxu0 0.0
        %442 = vmatprep.subr.mxu0 0.0
        %443 = vmatpush2.msra.mxu0 0.0
        %444 = vmatprep.subr.mxu0 0.0
        %445 = vmatpush2.msra.mxu0 0.0
        %446 = vmatprep.subr.mxu0 0.0
        %447 = vmatpush2.msra.mxu0 0.0
        %448 = vmatprep.subr.mxu0 0.0
        %449 = vmatpush2.msra.mxu0 0.0
        %450 = vmatprep.subr.mxu0 0.0
        %451 = vmatpush2.msra.mxu0 0.0
        %452 = vmatprep.subr.mxu0 0.0
        %453 = vmatpush2.msra.mxu0 0.0
        %454 = vmatprep.subr.mxu0 0.0
        %455 = vmatpush2.msra.mxu0 0.0
        %456 = vmatprep.subr.mxu0 0.0
        %457 = vmatpush2.msra.mxu0 0.0
        %458 = vmatprep.subr.mxu0 0.0
        %459 = vmatpush2.msra.mxu0 0.0
        %460 = vmatprep.mubr.f32.mxu0 0.0
        %461 = vmatmul.mubr.f32.gmra.mxu0 %v394
        %v462 = vpop.f32.mrf.mxu0
        %v463 = vadd.f32 %v390, %v462
        %v464 = vpop.f32.mrf.mxu0
        %465 = vdwg.mxu0
        %v467 = vcombine.high %v463, %v463
        %v469 = vunpack.c.l.s4 1966171168
        %v470 = vunpack.c.0.s8 %v469
        %v471 = vlaneseq
        %v472 = vshrl.u32 %v471, 7
        %v473 = vsub.s32 %v470, %v472
        %v474 = vrot.slane %v463, %v473
        %v476 = vunpack.c.l.s4 1966171168
        %v477 = vunpack.c.0.s8 %v476
        %v478 = vlaneseq
        %v479 = vshrl.u32 %v478, 7
        %v480 = vsub.s32 %v477, %v479
        %v481 = vrot.slane %v467, %v480
        %v482 = vcombine.high %v474, %v474
        %v483 = vcombine.high %v481, %v481
        %v485 = vunpack.c.l.s4 1966171168
        %v486 = vunpack.c.0.s8 %v485
        %v487 = vlaneseq
        %v488 = vshrl.u32 %v487, 7
        %v489 = vsub.s32 %v486, %v488
        %v490 = vrot.slane %v474, %v489
        %v492 = vunpack.c.l.s4 1966171168
        %v493 = vunpack.c.0.s8 %v492
        %v494 = vlaneseq
        %v495 = vshrl.u32 %v494, 7
        %v496 = vsub.s32 %v493, %v495
        %v497 = vrot.slane %v481, %v496
        %v499 = vunpack.c.l.s4 1966171168
        %v500 = vunpack.c.0.s8 %v499
        %v501 = vlaneseq
        %v502 = vshrl.u32 %v501, 7
        %v503 = vsub.s32 %v500, %v502
        %v504 = vrot.slane %v482, %v503
        %v506 = vunpack.c.l.s4 1966171168
        %v507 = vunpack.c.0.s8 %v506
        %v508 = vlaneseq
        %v509 = vshrl.u32 %v508, 7
        %v510 = vsub.s32 %v507, %v509
        %v511 = vrot.slane %v483, %v510
        %v512 = vcombine.high %v490, %v490
        %v513 = vcombine.high %v497, %v497
        %v514 = vcombine.high %v504, %v504
        %v515 = vcombine.high %v511, %v511
        %v516 = vlaneseq
        %v517 = vshrl.u32 %v516, 7
        %v518 = vsub.s32 0, %v517
        %v519 = vrot.slane %v490, %v518
        %v520 = vlaneseq
        %v521 = vshrl.u32 %v520, 7
        %v522 = vsub.s32 0, %v521
        %v523 = vrot.slane %v504, %v522
        %v524 = vlaneseq
        %v525 = vshrl.u32 %v524, 7
        %v526 = vsub.s32 0, %v525
        %v527 = vrot.slane %v512, %v526
        %v528 = vlaneseq
        %v529 = vshrl.u32 %v528, 7
        %v530 = vsub.s32 0, %v529
        %v531 = vrot.slane %v514, %v530
        %v532 = vlaneseq
        %v533 = vshrl.u32 %v532, 7
        %v534 = vsub.s32 0, %v533
        %v535 = vrot.slane %v497, %v534
        %v536 = vlaneseq
        %v537 = vshrl.u32 %v536, 7
        %v538 = vsub.s32 0, %v537
        %v539 = vrot.slane %v511, %v538
        %v540 = vlaneseq
        %v541 = vshrl.u32 %v540, 7
        %v542 = vsub.s32 0, %v541
        %v543 = vrot.slane %v513, %v542
        %v544 = vlaneseq
        %v545 = vshrl.u32 %v544, 7
        %v546 = vsub.s32 0, %v545
        %v547 = vrot.slane %v515, %v546
        %v556 = vmul.f32 %v519, %v373
        %v557 = vmul.f32 %v523, %v374
        %v558 = vmul.f32 %v527, %v375
        %v559 = vmul.f32 %v531, %v376
        %v560 = vmul.f32 %v535, %v377
        %v561 = vmul.f32 %v539, %v378
        %v562 = vmul.f32 %v543, %v379
        %v563 = vmul.f32 %v547, %v380
        %v564 = vsel %vm392, %v556, 0.0
        %565 = vadd.xlane.f32.xlu0 %v564
        %v566 = vpop.xlane.xlu0 %565
        %v567 = vsel %vm392, %v557, 0.0
        %568 = vadd.xlane.f32.xlu0 %v567
        %v569 = vpop.xlane.xlu0 %568
        %v570 = vsel %vm392, %v558, 0.0
        %571 = vadd.xlane.f32.xlu0 %v570
        %v572 = vpop.xlane.xlu0 %571
        %v573 = vsel %vm392, %v559, 0.0
        %574 = vadd.xlane.f32.xlu0 %v573
        %v575 = vpop.xlane.xlu0 %574
        %v576 = vsel %vm392, %v560, 0.0
        %577 = vadd.xlane.f32.xlu0 %v576
        %v578 = vpop.xlane.xlu0 %577
        %v579 = vsel %vm392, %v561, 0.0
        %580 = vadd.xlane.f32.xlu0 %v579
        %v581 = vpop.xlane.xlu0 %580
        %v582 = vsel %vm392, %v562, 0.0
        %583 = vadd.xlane.f32.xlu0 %v582
        %v584 = vpop.xlane.xlu0 %583
        %v585 = vsel %vm392, %v563, 0.0
        %586 = vadd.xlane.f32.xlu0 %v585
        %v587 = vpop.xlane.xlu0 %586
        %588 = vset.pattern.permute.xlu0 32
        %589 = vperm.xlu0 %588, %v463
        %v590 = vpop.permute.xlu0 %589
        %v591 = vlaneseq
        %v592 = vshrl.u32 %v591, 7
        %v593 = vsub.s32 0, %v592
        %v594 = vrot.slane %v590, %v593
        %v595 = vlaneseq
        %v596 = vshrl.u32 %v595, 7
        %v597 = vsub.s32 1, %v596
        %v598 = vrot.slane %v590, %v597
        %v599 = vlaneseq
        %v600 = vshrl.u32 %v599, 7
        %v601 = vsub.s32 2, %v600
        %v602 = vrot.slane %v590, %v601
        %v603 = vlaneseq
        %v604 = vshrl.u32 %v603, 7
        %v605 = vsub.s32 3, %v604
        %v606 = vrot.slane %v590, %v605
        %v607 = vlaneseq
        %v608 = vshrl.u32 %v607, 7
        %v609 = vsub.s32 4, %v608
        %v610 = vrot.slane %v590, %v609
        %v611 = vlaneseq
        %v612 = vshrl.u32 %v611, 7
        %v613 = vsub.s32 5, %v612
        %v614 = vrot.slane %v590, %v613
        %v615 = vlaneseq
        %v616 = vshrl.u32 %v615, 7
        %v617 = vsub.s32 6, %v616
        %v618 = vrot.slane %v590, %v617
        %v619 = vlaneseq
        %v620 = vshrl.u32 %v619, 7
        %v621 = vsub.s32 7, %v620
        %v622 = vrot.slane %v590, %v621
        %v631 = vadd.f32 %v566, %v594
        %v632 = vadd.f32 %v569, %v598
        %v633 = vadd.f32 %v572, %v602
        %v634 = vadd.f32 %v575, %v606
        %v635 = vadd.f32 %v578, %v610
        %v636 = vadd.f32 %v581, %v614
        %v637 = vadd.f32 %v584, %v618
        %v638 = vadd.f32 %v587, %v622
        %v639 = vtanh.pop %v631
        %v640 = vtanh.pop %v632
        %v641 = vtanh.pop %v633
        %v642 = vtanh.pop %v634
        %v643 = vtanh.pop %v635
        %v644 = vtanh.pop %v636
        %v645 = vtanh.pop %v637
        %v646 = vtanh.pop %v638
        %v647 = vmul.f32 %v639, 10.0
        %v648 = vmul.f32 %v640, 10.0
        %v649 = vmul.f32 %v641, 10.0
        %v650 = vmul.f32 %v642, 10.0
        %v651 = vmul.f32 %v643, 10.0
        %v652 = vmul.f32 %v644, 10.0
        %v653 = vmul.f32 %v645, 10.0
        %v654 = vmul.f32 %v646, 10.0
        %v655 = vld [vmem:[%s363] sm:$0xff]
        %v657 = vlaneseq
        %v658 = vshrl.u32 %v657, 7
        %v659 = vsub.s32 0, %v658
        %v660 = vrot.slane %v655, %v659
        %662 = vbcast.lane.b32.xlu0 %v660, 256
        %v663 = vpop.permute.xlu0 %662
        %v664 = vlaneseq
        %v665 = vshrl.u32 %v664, 7
        %v666 = vsub.s32 1, %v665
        %v667 = vrot.slane %v655, %v666
        %669 = vbcast.lane.b32.xlu0 %v667, 256
        %v670 = vpop.permute.xlu0 %669
        %v671 = vlaneseq
        %v672 = vshrl.u32 %v671, 7
        %v673 = vsub.s32 2, %v672
        %v674 = vrot.slane %v655, %v673
        %676 = vbcast.lane.b32.xlu0 %v674, 256
        %v677 = vpop.permute.xlu0 %676
        %v678 = vlaneseq
        %v679 = vshrl.u32 %v678, 7
        %v680 = vsub.s32 3, %v679
        %v681 = vrot.slane %v655, %v680
        %683 = vbcast.lane.b32.xlu0 %v681, 256
        %v684 = vpop.permute.xlu0 %683
        %v685 = vlaneseq
        %v686 = vshrl.u32 %v685, 7
        %v687 = vsub.s32 4, %v686
        %v688 = vrot.slane %v655, %v687
        %690 = vbcast.lane.b32.xlu0 %v688, 256
        %v691 = vpop.permute.xlu0 %690
        %v692 = vlaneseq
        %v693 = vshrl.u32 %v692, 7
        %v694 = vsub.s32 5, %v693
        %v695 = vrot.slane %v655, %v694
        %697 = vbcast.lane.b32.xlu0 %v695, 256
        %v698 = vpop.permute.xlu0 %697
        %v699 = vlaneseq
        %v700 = vshrl.u32 %v699, 7
        %v701 = vsub.s32 6, %v700
        %v702 = vrot.slane %v655, %v701
        %704 = vbcast.lane.b32.xlu0 %v702, 256
        %v705 = vpop.permute.xlu0 %704
        %v706 = vlaneseq
        %v707 = vshrl.u32 %v706, 7
        %v708 = vsub.s32 7, %v707
        %v709 = vrot.slane %v655, %v708
        %711 = vbcast.lane.b32.xlu0 %v709, 256
        %v712 = vpop.permute.xlu0 %711
        %v721 = vadd.f32 %v647, %v663
        %v722 = vadd.f32 %v648, %v670
        %v723 = vadd.f32 %v649, %v677
        %v724 = vadd.f32 %v650, %v684
        %v725 = vadd.f32 %v651, %v691
        %v726 = vadd.f32 %v652, %v698
        %v727 = vadd.f32 %v653, %v705
        %v728 = vadd.f32 %v654, %v712
        %737 = vset.pattern.permute.xlu0 0
        %738 = vperm.xlu0 %737, %v721
        %v739 = vpop.permute.xlu0 %738
        %740 = vset.pattern.permute.xlu0 0
        %741 = vperm.xlu0 %740, %v722
        %v742 = vpop.permute.xlu0 %741
        %743 = vset.pattern.permute.xlu0 0
        %744 = vperm.xlu0 %743, %v723
        %v745 = vpop.permute.xlu0 %744
        %746 = vset.pattern.permute.xlu0 0
        %747 = vperm.xlu0 %746, %v724
        %v748 = vpop.permute.xlu0 %747
        %749 = vset.pattern.permute.xlu0 0
        %750 = vperm.xlu0 %749, %v725
        %v751 = vpop.permute.xlu0 %750
        %752 = vset.pattern.permute.xlu0 0
        %753 = vperm.xlu0 %752, %v726
        %v754 = vpop.permute.xlu0 %753
        %755 = vset.pattern.permute.xlu0 0
        %756 = vperm.xlu0 %755, %v727
        %v757 = vpop.permute.xlu0 %756
        %758 = vset.pattern.permute.xlu0 0
        %759 = vperm.xlu0 %758, %v728
        %v760 = vpop.permute.xlu0 %759
        %v761 = vlaneseq
        %v762 = vand.u32 %v761, 127
        %v763 = vlaneseq
        %v764 = vshrl.u32 %v763, 7
        %v765 = vsub.s32 %v762, %v764
        %v766 = vrot.slane %v739, %v765
        %v767 = vlaneseq
        %v768 = vshrl.u32 %v767, 7
        %v769 = vsub.s32 %v762, %v768
        %v770 = vrot.slane %v742, %v769
        %v771 = vlaneseq
        %v772 = vshrl.u32 %v771, 7
        %v773 = vsub.s32 %v762, %v772
        %v774 = vrot.slane %v745, %v773
        %v775 = vlaneseq
        %v776 = vshrl.u32 %v775, 7
        %v777 = vsub.s32 %v762, %v776
        %v778 = vrot.slane %v748, %v777
        %v779 = vlaneseq
        %v780 = vshrl.u32 %v779, 7
        %v781 = vsub.s32 %v762, %v780
        %v782 = vrot.slane %v751, %v781
        %v783 = vlaneseq
        %v784 = vshrl.u32 %v783, 7
        %v785 = vsub.s32 %v762, %v784
        %v786 = vrot.slane %v754, %v785
        %v787 = vlaneseq
        %v788 = vshrl.u32 %v787, 7
        %v789 = vsub.s32 %v762, %v788
        %v790 = vrot.slane %v757, %v789
        %v791 = vlaneseq
        %v792 = vshrl.u32 %v791, 7
        %v793 = vsub.s32 %v762, %v792
        %v794 = vrot.slane %v760, %v793
        %vm795 = vcmask 1041409
        %v796 = vsel %vm795, %v770, %v766
        %vm797 = vcmask 1042434
        %v798 = vsel %vm797, %v774, %v796
        %vm799 = vcmask 1043459
        %v800 = vsel %vm799, %v778, %v798
        %vm801 = vcmask 1044484
        %v802 = vsel %vm801, %v782, %v800
        %vm803 = vcmask 1045509
        %v804 = vsel %vm803, %v786, %v802
        %vm805 = vcmask 1046534
        %v806 = vsel %vm805, %v790, %v804
        %vm807 = vcmask 1047559
        %v808 = vsel %vm807, %v794, %v806
        %vm810 = vcmask 64512
        %v811 = vsel %vm810, %v808, -inf
        %812 = vmax.xlane.f32.xlu0 %v811
        %v813 = vpop.xlane.xlu0 %812
        %v815 = vlaneseq
        %v816 = vshrl.u32 %v815, 7
        %v817 = vsub.s32 0, %v816
        %v818 = vrot.slane %v813, %v817
        %v819 = vlaneseq
        %v820 = vshrl.u32 %v819, 7
        %v821 = vsub.s32 1, %v820
        %v822 = vrot.slane %v813, %v821
        %v823 = vlaneseq
        %v824 = vshrl.u32 %v823, 7
        %v825 = vsub.s32 2, %v824
        %v826 = vrot.slane %v813, %v825
        %v827 = vlaneseq
        %v828 = vshrl.u32 %v827, 7
        %v829 = vsub.s32 3, %v828
        %v830 = vrot.slane %v813, %v829
        %v831 = vlaneseq
        %v832 = vshrl.u32 %v831, 7
        %v833 = vsub.s32 4, %v832
        %v834 = vrot.slane %v813, %v833
        %v835 = vlaneseq
        %v836 = vshrl.u32 %v835, 7
        %v837 = vsub.s32 5, %v836
        %v838 = vrot.slane %v813, %v837
        %v839 = vlaneseq
        %v840 = vshrl.u32 %v839, 7
        %v841 = vsub.s32 6, %v840
        %v842 = vrot.slane %v813, %v841
        %v843 = vlaneseq
        %v844 = vshrl.u32 %v843, 7
        %v845 = vsub.s32 7, %v844
        %v846 = vrot.slane %v813, %v845
        %v855 = vsub.f32 %v721, %v818
        %v856 = vsub.f32 %v722, %v822
        %v857 = vsub.f32 %v723, %v826
        %v858 = vsub.f32 %v724, %v830
        %v859 = vsub.f32 %v725, %v834
        %v860 = vsub.f32 %v726, %v838
        %v861 = vsub.f32 %v727, %v842
        %v862 = vsub.f32 %v728, %v846
        %v863 = vmul.f32 %v855, 1.442695
        %v864 = vpow.pop %v863
        %v865 = vmul.f32 %v856, 1.442695
        %v866 = vpow.pop %v865
        %v867 = vmul.f32 %v857, 1.442695
        %v868 = vpow.pop %v867
        %v869 = vmul.f32 %v858, 1.442695
        %v870 = vpow.pop %v869
        %v871 = vmul.f32 %v859, 1.442695
        %v872 = vpow.pop %v871
        %v873 = vmul.f32 %v860, 1.442695
        %v874 = vpow.pop %v873
        %v875 = vmul.f32 %v861, 1.442695
        %v876 = vpow.pop %v875
        %v877 = vmul.f32 %v862, 1.442695
        %v878 = vpow.pop %v877
        %887 = vset.pattern.permute.xlu0 0
        %888 = vperm.xlu0 %887, %v864
        %v889 = vpop.permute.xlu0 %888
        %890 = vset.pattern.permute.xlu0 0
        %891 = vperm.xlu0 %890, %v866
        %v892 = vpop.permute.xlu0 %891
        %893 = vset.pattern.permute.xlu0 0
        %894 = vperm.xlu0 %893, %v868
        %v895 = vpop.permute.xlu0 %894
        %896 = vset.pattern.permute.xlu0 0
        %897 = vperm.xlu0 %896, %v870
        %v898 = vpop.permute.xlu0 %897
        %899 = vset.pattern.permute.xlu0 0
        %900 = vperm.xlu0 %899, %v872
        %v901 = vpop.permute.xlu0 %900
        %902 = vset.pattern.permute.xlu0 0
        %903 = vperm.xlu0 %902, %v874
        %v904 = vpop.permute.xlu0 %903
        %905 = vset.pattern.permute.xlu0 0
        %906 = vperm.xlu0 %905, %v876
        %v907 = vpop.permute.xlu0 %906
        %908 = vset.pattern.permute.xlu0 0
        %909 = vperm.xlu0 %908, %v878
        %v910 = vpop.permute.xlu0 %909
        %v911 = vlaneseq
        %v912 = vshrl.u32 %v911, 7
        %v913 = vsub.s32 %v762, %v912
        %v914 = vrot.slane %v889, %v913
        %v915 = vlaneseq
        %v916 = vshrl.u32 %v915, 7
        %v917 = vsub.s32 %v762, %v916
        %v918 = vrot.slane %v892, %v917
        %v919 = vlaneseq
        %v920 = vshrl.u32 %v919, 7
        %v921 = vsub.s32 %v762, %v920
        %v922 = vrot.slane %v895, %v921
        %v923 = vlaneseq
        %v924 = vshrl.u32 %v923, 7
        %v925 = vsub.s32 %v762, %v924
        %v926 = vrot.slane %v898, %v925
        %v927 = vlaneseq
        %v928 = vshrl.u32 %v927, 7
        %v929 = vsub.s32 %v762, %v928
        %v930 = vrot.slane %v901, %v929
        %v931 = vlaneseq
        %v932 = vshrl.u32 %v931, 7
        %v933 = vsub.s32 %v762, %v932
        %v934 = vrot.slane %v904, %v933
        %v935 = vlaneseq
        %v936 = vshrl.u32 %v935, 7
        %v937 = vsub.s32 %v762, %v936
        %v938 = vrot.slane %v907, %v937
        %v939 = vlaneseq
        %v940 = vshrl.u32 %v939, 7
        %v941 = vsub.s32 %v762, %v940
        %v942 = vrot.slane %v910, %v941
        %v943 = vsel %vm795, %v918, %v914
        %v944 = vsel %vm797, %v922, %v943
        %v945 = vsel %vm799, %v926, %v944
        %v946 = vsel %vm801, %v930, %v945
        %v947 = vsel %vm803, %v934, %v946
        %v948 = vsel %vm805, %v938, %v947
        %v949 = vsel %vm807, %v942, %v948
        %v951 = vsel %vm810, %v949, 0.0
        %952 = vadd.xlane.f32.xlu0 %v951
        %v953 = vpop.xlane.xlu0 %952
        %v954 = vrcp.pop %v953
        %v956 = vlaneseq
        %v957 = vshrl.u32 %v956, 7
        %v958 = vsub.s32 0, %v957
        %v959 = vrot.slane %v954, %v958
        %v960 = vlaneseq
        %v961 = vshrl.u32 %v960, 7
        %v962 = vsub.s32 1, %v961
        %v963 = vrot.slane %v954, %v962
        %v964 = vlaneseq
        %v965 = vshrl.u32 %v964, 7
        %v966 = vsub.s32 2, %v965
        %v967 = vrot.slane %v954, %v966
        %v968 = vlaneseq
        %v969 = vshrl.u32 %v968, 7
        %v970 = vsub.s32 3, %v969
        %v971 = vrot.slane %v954, %v970
        %v972 = vlaneseq
        %v973 = vshrl.u32 %v972, 7
        %v974 = vsub.s32 4, %v973
        %v975 = vrot.slane %v954, %v974
        %v976 = vlaneseq
        %v977 = vshrl.u32 %v976, 7
        %v978 = vsub.s32 5, %v977
        %v979 = vrot.slane %v954, %v978
        %v980 = vlaneseq
        %v981 = vshrl.u32 %v980, 7
        %v982 = vsub.s32 6, %v981
        %v983 = vrot.slane %v954, %v982
        %v984 = vlaneseq
        %v985 = vshrl.u32 %v984, 7
        %v986 = vsub.s32 7, %v985
        %v987 = vrot.slane %v954, %v986
        %v996 = vmul.f32 %v864, %v959
        %v997 = vmul.f32 %v866, %v963
        %v998 = vmul.f32 %v868, %v967
        %v999 = vmul.f32 %v870, %v971
        %v1000 = vmul.f32 %v872, %v975
        %v1001 = vmul.f32 %v874, %v979
        %v1002 = vmul.f32 %v876, %v983
        %v1003 = vmul.f32 %v878, %v987
        %v1004 = vld [vmem:[%s5] sm:$0xff]
        %v1005 = vld [vmem:[%s5 + $0x8] sm:$0xff]
        %v1006 = vld [vmem:[%s5 + $0x10] sm:$0xff]
        %v1007 = vld [vmem:[%s5 + $0x18] sm:$0xff]
        %v1009 = vsel %vm392, %v373, 0
        %v1012 = vsel %vm392, %v374, 0
        %v1015 = vsel %vm392, %v375, 0
        %v1018 = vsel %vm392, %v376, 0
        %v1021 = vsel %vm392, %v377, 0
        %v1024 = vsel %vm392, %v378, 0
        %v1027 = vsel %vm392, %v379, 0
        %v1030 = vsel %vm392, %v380, 0
        %1032 = vmatprep.subr.mxu0 0.0
        %1033 = vmatpush1.msra.mxu0 0.0
        %1034 = vmatprep.subr.mxu0 0.0
        %1035 = vmatpush1.msra.mxu0 0.0
        %1036 = vmatprep.subr.mxu0 0.0
        %1037 = vmatpush1.msra.mxu0 0.0
        %1038 = vmatprep.subr.mxu0 0.0
        %1039 = vmatpush1.msra.mxu0 0.0
        %1040 = vmatprep.subr.mxu0 0.0
        %1041 = vmatpush1.msra.mxu0 0.0
        %1042 = vmatprep.subr.mxu0 0.0
        %1043 = vmatpush1.msra.mxu0 0.0
        %1044 = vmatprep.subr.mxu0 0.0
        %1045 = vmatpush1.msra.mxu0 0.0
        %1046 = vmatprep.subr.mxu0 0.0
        %1047 = vmatpush1.msra.mxu0 0.0
        %1048 = vmatprep.subr.mxu0 0.0
        %1049 = vmatpush1.msra.mxu0 0.0
        %1050 = vmatprep.subr.mxu0 0.0
        %1051 = vmatpush1.msra.mxu0 0.0
        %1052 = vmatprep.subr.mxu0 0.0
        %1053 = vmatpush1.msra.mxu0 0.0
        %1054 = vmatprep.subr.mxu0 0.0
        %1055 = vmatpush1.msra.mxu0 0.0
        %1056 = vmatprep.subr.mxu0 0.0
        %1057 = vmatpush1.msra.mxu0 %v1007
        %1058 = vmatprep.subr.mxu0 0.0
        %1059 = vmatpush1.msra.mxu0 %v1006
        %1060 = vmatprep.subr.mxu0 0.0
        %1061 = vmatpush1.msra.mxu0 %v1005
        %1062 = vmatprep.subr.mxu0 0.0
        %1063 = vmatpush1.msra.mxu0 %v1004
        %1064 = vmatprep.subr.mxu0 0.0
        %1065 = vmatpush2.msra.mxu0 0.0
        %1066 = vmatprep.subr.mxu0 0.0
        %1067 = vmatpush2.msra.mxu0 0.0
        %1068 = vmatprep.subr.mxu0 0.0
        %1069 = vmatpush2.msra.mxu0 0.0
        %1070 = vmatprep.subr.mxu0 0.0
        %1071 = vmatpush2.msra.mxu0 0.0
        %1072 = vmatprep.subr.mxu0 0.0
        %1073 = vmatpush2.msra.mxu0 0.0
        %1074 = vmatprep.subr.mxu0 0.0
        %1075 = vmatpush2.msra.mxu0 0.0
        %1076 = vmatprep.subr.mxu0 0.0
        %1077 = vmatpush2.msra.mxu0 0.0
        %1078 = vmatprep.subr.mxu0 0.0
        %1079 = vmatpush2.msra.mxu0 0.0
        %1080 = vmatprep.subr.mxu0 0.0
        %1081 = vmatpush2.msra.mxu0 0.0
        %1082 = vmatprep.subr.mxu0 0.0
        %1083 = vmatpush2.msra.mxu0 0.0
        %1084 = vmatprep.subr.mxu0 0.0
        %1085 = vmatpush2.msra.mxu0 0.0
        %1086 = vmatprep.subr.mxu0 0.0
        %1087 = vmatpush2.msra.mxu0 0.0
        %1088 = vmatprep.subr.mxu0 0.0
        %1089 = vmatpush2.msra.mxu0 0.0
        %1090 = vmatprep.subr.mxu0 0.0
        %1091 = vmatpush2.msra.mxu0 0.0
        %1092 = vmatprep.subr.mxu0 0.0
        %1093 = vmatpush2.msra.mxu0 0.0
        %1094 = vmatprep.subr.mxu0 0.0
        %1095 = vmatpush2.msra.mxu0 0.0
        %1096 = vmatprep.mubr.f32.mxu0 0.0
        %1097 = vmatmul.mubr.f32.gmra.mxu0 %v1009
        %v1098 = vpop.f32.mrf.mxu0
        %v1099 = vadd.f32 0.0, %v1098
        %v1100 = vpop.f32.mrf.mxu0
        %1101 = vmatprep.mubr.f32.mxu0 0.0
        %1102 = vmatmul.mubr.f32.gmra.mxu0 %v1012
        %v1103 = vpop.f32.mrf.mxu0
        %v1104 = vadd.f32 0.0, %v1103
        %v1105 = vpop.f32.mrf.mxu0
        %1106 = vmatprep.mubr.f32.mxu0 0.0
        %1107 = vmatmul.mubr.f32.gmra.mxu0 %v1015
        %v1108 = vpop.f32.mrf.mxu0
        %v1109 = vadd.f32 0.0, %v1108
        %v1110 = vpop.f32.mrf.mxu0
        %1111 = vmatprep.mubr.f32.mxu0 0.0
        %1112 = vmatmul.mubr.f32.gmra.mxu0 %v1018
        %v1113 = vpop.f32.mrf.mxu0
        %v1114 = vadd.f32 0.0, %v1113
        %v1115 = vpop.f32.mrf.mxu0
        %1116 = vmatprep.mubr.f32.mxu0 0.0
        %1117 = vmatmul.mubr.f32.gmra.mxu0 %v1021
        %v1118 = vpop.f32.mrf.mxu0
        %v1119 = vadd.f32 0.0, %v1118
        %v1120 = vpop.f32.mrf.mxu0
        %1121 = vmatprep.mubr.f32.mxu0 0.0
        %1122 = vmatmul.mubr.f32.gmra.mxu0 %v1024
        %v1123 = vpop.f32.mrf.mxu0
        %v1124 = vadd.f32 0.0, %v1123
        %v1125 = vpop.f32.mrf.mxu0
        %1126 = vmatprep.mubr.f32.mxu0 0.0
        %1127 = vmatmul.mubr.f32.gmra.mxu0 %v1027
        %v1128 = vpop.f32.mrf.mxu0
        %v1129 = vadd.f32 0.0, %v1128
        %v1130 = vpop.f32.mrf.mxu0
        %1131 = vmatprep.mubr.f32.mxu0 0.0
        %1132 = vmatmul.mubr.f32.gmra.mxu0 %v1030
        %v1133 = vpop.f32.mrf.mxu0
        %v1134 = vadd.f32 0.0, %v1133
        %v1135 = vpop.f32.mrf.mxu0
        %1136 = vdwg.mxu0
        %v1137 = vld [vmem:[#allocation2] sm:$0x1]
        %v1139 = vlaneseq
        %v1140 = vshrl.u32 %v1139, 7
        %v1141 = vsub.s32 0, %v1140
        %v1142 = vrot.slane %v1137, %v1141
        %1143 = vset.pattern.permute.xlu0 0
        %1144 = vperm.xlu0 %1143, %v1142
        %v1145 = vpop.permute.xlu0 %1144
        %v1147 = vadd.f32 %v1099, %v1145
        %v1148 = vadd.f32 %v1104, %v1145
        %v1149 = vadd.f32 %v1109, %v1145
        %v1150 = vadd.f32 %v1114, %v1145
        %v1151 = vadd.f32 %v1119, %v1145
        %v1152 = vadd.f32 %v1124, %v1145
        %v1153 = vadd.f32 %v1129, %v1145
        %v1154 = vadd.f32 %v1134, %v1145
        %1163 = vset.pattern.permute.xlu0 0
        %1164 = vperm.xlu0 %1163, %v996
        %v1165 = vpop.permute.xlu0 %1164
        %1166 = vset.pattern.permute.xlu0 0
        %1167 = vperm.xlu0 %1166, %v997
        %v1168 = vpop.permute.xlu0 %1167
        %1169 = vset.pattern.permute.xlu0 0
        %1170 = vperm.xlu0 %1169, %v998
        %v1171 = vpop.permute.xlu0 %1170
        %1172 = vset.pattern.permute.xlu0 0
        %1173 = vperm.xlu0 %1172, %v999
        %v1174 = vpop.permute.xlu0 %1173
        %1175 = vset.pattern.permute.xlu0 0
        %1176 = vperm.xlu0 %1175, %v1000
        %v1177 = vpop.permute.xlu0 %1176
        %1178 = vset.pattern.permute.xlu0 0
        %1179 = vperm.xlu0 %1178, %v1001
        %v1180 = vpop.permute.xlu0 %1179
        %1181 = vset.pattern.permute.xlu0 0
        %1182 = vperm.xlu0 %1181, %v1002
        %v1183 = vpop.permute.xlu0 %1182
        %1184 = vset.pattern.permute.xlu0 0
        %1185 = vperm.xlu0 %1184, %v1003
        %v1186 = vpop.permute.xlu0 %1185
        %v1187 = vlaneseq
        %v1188 = vshrl.u32 %v1187, 7
        %v1189 = vsub.s32 %v762, %v1188
        %v1190 = vrot.slane %v1165, %v1189
        %v1191 = vlaneseq
        %v1192 = vshrl.u32 %v1191, 7
        %v1193 = vsub.s32 %v762, %v1192
        %v1194 = vrot.slane %v1168, %v1193
        %v1195 = vlaneseq
        %v1196 = vshrl.u32 %v1195, 7
        %v1197 = vsub.s32 %v762, %v1196
        %v1198 = vrot.slane %v1171, %v1197
        %v1199 = vlaneseq
        %v1200 = vshrl.u32 %v1199, 7
        %v1201 = vsub.s32 %v762, %v1200
        %v1202 = vrot.slane %v1174, %v1201
        %v1203 = vlaneseq
        %v1204 = vshrl.u32 %v1203, 7
        %v1205 = vsub.s32 %v762, %v1204
        %v1206 = vrot.slane %v1177, %v1205
        %v1207 = vlaneseq
        %v1208 = vshrl.u32 %v1207, 7
        %v1209 = vsub.s32 %v762, %v1208
        %v1210 = vrot.slane %v1180, %v1209
        %v1211 = vlaneseq
        %v1212 = vshrl.u32 %v1211, 7
        %v1213 = vsub.s32 %v762, %v1212
        %v1214 = vrot.slane %v1183, %v1213
        %v1215 = vlaneseq
        %v1216 = vshrl.u32 %v1215, 7
        %v1217 = vsub.s32 %v762, %v1216
        %v1218 = vrot.slane %v1186, %v1217
        %v1219 = vsel %vm795, %v1194, %v1190
        %v1220 = vsel %vm797, %v1198, %v1219
        %v1221 = vsel %vm799, %v1202, %v1220
        %v1222 = vsel %vm801, %v1206, %v1221
        %v1223 = vsel %vm803, %v1210, %v1222
        %v1224 = vsel %vm805, %v1214, %v1223
        %v1225 = vsel %vm807, %v1218, %v1224
        %1227 = vst.msk [vmem:[%s367] sm:$0xff] %vm810, %v1225
        %v1228 = vmul.f32 %v996, %v1147
        %v1229 = vmul.f32 %v997, %v1148
        %v1230 = vmul.f32 %v998, %v1149
        %v1231 = vmul.f32 %v999, %v1150
        %v1232 = vmul.f32 %v1000, %v1151
        %v1233 = vmul.f32 %v1001, %v1152
        %v1234 = vmul.f32 %v1002, %v1153
        %v1235 = vmul.f32 %v1003, %v1154
        %1244 = vset.pattern.permute.xlu0 0
        %1245 = vperm.xlu0 %1244, %v1228
        %v1246 = vpop.permute.xlu0 %1245
        %1247 = vset.pattern.permute.xlu0 0
        %1248 = vperm.xlu0 %1247, %v1229
        %v1249 = vpop.permute.xlu0 %1248
        %1250 = vset.pattern.permute.xlu0 0
        %1251 = vperm.xlu0 %1250, %v1230
        %v1252 = vpop.permute.xlu0 %1251
        %1253 = vset.pattern.permute.xlu0 0
        %1254 = vperm.xlu0 %1253, %v1231
        %v1255 = vpop.permute.xlu0 %1254
        %1256 = vset.pattern.permute.xlu0 0
        %1257 = vperm.xlu0 %1256, %v1232
        %v1258 = vpop.permute.xlu0 %1257
        %1259 = vset.pattern.permute.xlu0 0
        %1260 = vperm.xlu0 %1259, %v1233
        %v1261 = vpop.permute.xlu0 %1260
        %1262 = vset.pattern.permute.xlu0 0
        %1263 = vperm.xlu0 %1262, %v1234
        %v1264 = vpop.permute.xlu0 %1263
        %1265 = vset.pattern.permute.xlu0 0
        %1266 = vperm.xlu0 %1265, %v1235
        %v1267 = vpop.permute.xlu0 %1266
        %v1268 = vlaneseq
        %v1269 = vshrl.u32 %v1268, 7
        %v1270 = vsub.s32 %v762, %v1269
        %v1271 = vrot.slane %v1246, %v1270
        %v1272 = vlaneseq
        %v1273 = vshrl.u32 %v1272, 7
        %v1274 = vsub.s32 %v762, %v1273
        %v1275 = vrot.slane %v1249, %v1274
        %v1276 = vlaneseq
        %v1277 = vshrl.u32 %v1276, 7
        %v1278 = vsub.s32 %v762, %v1277
        %v1279 = vrot.slane %v1252, %v1278
        %v1280 = vlaneseq
        %v1281 = vshrl.u32 %v1280, 7
        %v1282 = vsub.s32 %v762, %v1281
        %v1283 = vrot.slane %v1255, %v1282
        %v1284 = vlaneseq
        %v1285 = vshrl.u32 %v1284, 7
        %v1286 = vsub.s32 %v762, %v1285
        %v1287 = vrot.slane %v1258, %v1286
        %v1288 = vlaneseq
        %v1289 = vshrl.u32 %v1288, 7
        %v1290 = vsub.s32 %v762, %v1289
        %v1291 = vrot.slane %v1261, %v1290
        %v1292 = vlaneseq
        %v1293 = vshrl.u32 %v1292, 7
        %v1294 = vsub.s32 %v762, %v1293
        %v1295 = vrot.slane %v1264, %v1294
        %v1296 = vlaneseq
        %v1297 = vshrl.u32 %v1296, 7
        %v1298 = vsub.s32 %v762, %v1297
        %v1299 = vrot.slane %v1267, %v1298
        %v1300 = vsel %vm795, %v1275, %v1271
        %v1301 = vsel %vm797, %v1279, %v1300
        %v1302 = vsel %vm799, %v1283, %v1301
        %v1303 = vsel %vm801, %v1287, %v1302
        %v1304 = vsel %vm803, %v1291, %v1303
        %v1305 = vsel %vm805, %v1295, %v1304
        %v1306 = vsel %vm807, %v1299, %v1305
        %1308 = vst.msk [vmem:[%s371] sm:$0xff] %vm810, %v1306
        %p1309 = scmp.lt.s32.totalorder %s25, 1
        %s1310 = scalar_select %p1309, %s25, 1
        %s1311 = smul.addr %s1310, 8
        %s1312 = scalar_lea.vmem %s7, %s1311
        %p1313 = scmp.lt.s32.totalorder %s25, 1
        %s1314 = scalar_select %p1313, %s25, 1
        %s1315 = smul.addr %s1314, 8
        %s1316 = scalar_lea.vmem %s8, %s1315
        // Predicated region
        $region53: #{tpu_custom_call.1} parent=47 // pred_check
          %p1317 = pneg %p205
        $region54: #{tpu_custom_call.1} parent=47 // pred_check_branch
          %1319 = sbr.rel (%p1317) target = $region56
        $region55: #{tpu_custom_call.1} parent=47 // pred_region
          _
        $region56: #{tpu_custom_call.1} parent=47 // pred_fallthru
          _
        // Predicated region
        $region57: #{tpu_custom_call.1} parent=47 // pred_check
          %p1320 = pneg %p231
        $region58: #{tpu_custom_call.1} parent=47 // pred_check_branch
          %1322 = sbr.rel (%p1320) target = $region60
        $region59: #{tpu_custom_call.1} parent=47 // pred_region
          _
        $region60: #{tpu_custom_call.1} parent=47 // pred_fallthru
          _
      $region48: #{tpu_custom_call.1} parent=5 // pred_fallthru
        _
      %p1323 = scmp.le.s32.totalorder 2, %s20
      // Predicated region
      $region61: #{tpu_custom_call.1} parent=5 // pred_check
        %p1324 = pneg %p1323
      $region62: #{tpu_custom_call.1} parent=5 // pred_check_branch
        %1326 = sbr.rel (%p1324) target = $region64
      $region63: #{tpu_custom_call.1} parent=5 // pred_region
        %s1327 = ssub.s32 %s20, 2
        // Predicated region
        $region65: #{tpu_custom_call.1} parent=63 // pred_check
          %p1328 = pneg %p211
        $region66: #{tpu_custom_call.1} parent=63 // pred_check_branch
          %1330 = sbr.rel (%p1328) target = $region68
        $region67: #{tpu_custom_call.1} parent=63 // pred_region
          %p1331 = scmp.lt.s32.totalorder %s26, 1
          %s1332 = scalar_select %p1331, %s26, 1
          %s1333 = smul.addr %s1332, 8
          %s1334 = scalar_lea.vmem %s7, %s1333
        $region68: #{tpu_custom_call.1} parent=63 // pred_fallthru
          _
        // Predicated region
        $region69: #{tpu_custom_call.1} parent=63 // pred_check
          %p1335 = pneg %p237
        $region70: #{tpu_custom_call.1} parent=63 // pred_check_branch
          %1337 = sbr.rel (%p1335) target = $region72
        $region71: #{tpu_custom_call.1} parent=63 // pred_region
          %p1338 = scmp.lt.s32.totalorder %s26, 1
          %s1339 = scalar_select %p1338, %s26, 1
          %s1340 = smul.addr %s1339, 8
          %s1341 = scalar_lea.vmem %s8, %s1340
        $region72: #{tpu_custom_call.1} parent=63 // pred_fallthru
          _
      $region64: #{tpu_custom_call.1} parent=5 // pred_fallthru
        _
    $region6: #{tpu_custom_call.1} parent=1 // loop_footer
      %s24 = sadd.s32 1, %s20
    $region7: #{tpu_custom_call.1} parent=1 // loop_footer_branch
      %19 = sbr.rel target = $region3
    $region8: #{tpu_custom_call.1} parent=1 // loop_exit
      _
    %1342 = vsyncpa [#allocation4], 1
    %s1343 = scalar_lea.sflag [#allocation4], 1
    %1344 = vsyncpa %s1343, 1

// kernel: tpu_custom_call.1
$region0: #{tpu_custom_call.1}
  #allocation0 [shape = 'u32[]', space=smem, size = 0x4, offset = 0x4, fixed_abs, tag = 'smem constant byte address 0x4 - core index']
  #allocation1 [shape = 'u32[144,128]{1,0:T(1,128)}', space=vmem, size = 0x12000, scoped, tag = 'internal scratch']
  #allocation2 [shape = 'f32[1,1]{1,0:T(1,128)S(1)}', space=vmem, size = 0x200, scoped, tag = 'scoped memory for tpu_custom_call.1']
  %s0 = inlined_call_operand.vmem [shape: f32[16,32], index: 0, kind: input, shape index: {}]
  %s1 = inlined_call_operand.hbm [shape: f32[16,8,32], index: 1, kind: input, shape index: {}]
  %s2 = inlined_call_operand.vmem [shape: f32[16,8], index: 2, kind: input, shape index: {}]
  %s3 = inlined_call_operand.hbm [shape: f32[32,33], index: 3, kind: input, shape index: {}]
  %s4 = inlined_call_operand.vmem [shape: f32[1,33], index: 4, kind: input, shape index: {}]
  %s5 = inlined_call_operand.vmem [shape: f32[1,32], index: 5, kind: input, shape index: {}]
  %s6 = inlined_call_operand.<no memory space> [shape: f32[1,1], index: 6, kind: input, shape index: {}]
  %s7 = inlined_call_operand.vmem [shape: f32[16,8], index: 7, kind: output, shape index: {0}]
  %s8 = inlined_call_operand.vmem [shape: f32[16,8], index: 8, kind: output, shape index: {1}]
  %9 = xla_tuple %s7, %s8
  %s10 = sld [smem:[#allocation0]]
  $region77: #{tpu_custom_call.1} parent=0
    _
  %s12 = ssub.s32 1, %s10
  %s13 = scalar_select 0, %s12, %s10
  %v14 = vstv %s6
  %15 = vst [vmem:[#allocation2] sm:$0x1] %v14
  $region1: #{tpu_custom_call.1} parent=0
    #allocation3 [shape = 'u8[65536]{0}', space=vmem, size = 0x10000, scoped, tag = 'input window, operand 1']
    #allocation4 [shape = 's32[2]{0}', space=sflag, size = 0x8, scoped, tag = 'scoped memory for tpu_custom_call.1']
    #allocation5 [shape = 'u8[16384]{0}', space=vmem, size = 0x4000, scoped, tag = 'input window, operand 3, single buffered']
    #allocation6 [shape = 's32[1]{0}', space=sflag, size = 0x4, scoped, tag = 'scoped memory for tpu_custom_call.1']
    %16 = vsyncpa [#allocation4], 0
    %s17 = scalar_lea.sflag [#allocation4], 1
    %18 = vsyncpa %s17, 0
    %19 = vsyncpa [#allocation6], 0
    loop: start=0, step=1, limit=4
    $region2: #{tpu_custom_call.1} parent=1 // loop_pre_header
      _
    $region3: #{tpu_custom_call.1} parent=1 // loop_header
      %s21 = sphi 0, %s25
      %p22 = scmp.ge.s32.totalorder %s21, 4
      %s31 = sphi 0, %s33
      %s34 = sphi 0, %s31
      %s35 = sphi 0, %s34
      %s51 = sphi 0, %s35
      %s57 = sphi 0, %s59
      %s60 = sphi 0, %s57
      %s61 = sphi 0, %s60
      %s77 = sphi 0, %s61
      %s83 = sphi 0, %s85
      %s86 = sphi 0, %s83
      %s87 = sphi 0, %s86
      %s103 = sphi 0, %s87
      %s107 = sphi 0, %s107
      %s109 = sphi 0, %s107
      %s110 = sphi 0, %s109
      %s124 = sphi 0, %s110
      %s128 = sphi 0, %s128
      %s130 = sphi 0, %s128
      %s131 = sphi 0, %s130
      %s145 = sphi 0, %s131
      %s149 = sphi 0, %s149
      %s151 = sphi 0, %s149
      %s152 = sphi 0, %s151
      %s166 = sphi 0, %s152
      %s170 = sphi 0, %s170
      %s172 = sphi 0, %s170
      %s173 = sphi 0, %s172
      %s187 = sphi 0, %s173
      %s193 = sphi 0, %s195
      %s196 = sphi 0, %s193
      %s197 = sphi 0, %s196
      %s213 = sphi 0, %s197
      %s219 = sphi 0, %s221
      %s222 = sphi 0, %s219
      %s223 = sphi 0, %s222
      %s239 = sphi 0, %s223
    $region4: #{tpu_custom_call.1} parent=1 // loop_header_branch
      %24 = sbr.rel (%p22) target = $region8
    $region5: #{tpu_custom_call.1} parent=1 // loop_body
      %s26 = ssub.s32 %s21, 1
      %s27 = ssub.s32 %s21, 2
      %s28 = sadd.s32 %s21, 1
      %s29 = ssub.s32 %s21, %s28
      %p30 = scmp.eq.s32.totalorder %s29, 0
      %s32 = sadd.s32 %s31, 1
      %s33 = scalar_select %p30, %s31, %s32
      %p36 = pneg %p30
      %p37 = scmp.eq.s32.totalorder %s21, 1
      %p38 = por %p36, %p37
      %p39 = scmp.ne.s32.totalorder %s31, %s34
      %p40 = scmp.eq.s32.totalorder %s21, 0
      %p41 = por %p39, %p40
      %p42 = scmp.ne.s32.totalorder %s31, %s34
      %p43 = scmp.eq.s32.totalorder %s26, 1
      %p44 = por %p42, %p43
      %p45 = scmp.ne.s32.totalorder %s34, %s35
      %p46 = scmp.eq.s32.totalorder %s26, 0
      %p47 = por %p45, %p46
      %p48 = scmp.ne.s32.totalorder %s34, %s35
      %p49 = scmp.eq.s32.totalorder %s27, 1
      %p50 = por %p48, %p49
      %p52 = scmp.ne.s32.totalorder %s35, %s51
      %p53 = scmp.eq.s32.totalorder %s27, 0
      %p54 = por %p52, %p53
      %s55 = ssub.s32 %s21, %s28
      %p56 = scmp.eq.s32.totalorder %s55, 0
      %s58 = sadd.s32 %s57, 1
      %s59 = scalar_select %p56, %s57, %s58
      %p62 = pneg %p56
      %p63 = scmp.eq.s32.totalorder %s21, 1
      %p64 = por %p62, %p63
      %p65 = scmp.ne.s32.totalorder %s57, %s60
      %p66 = scmp.eq.s32.totalorder %s21, 0
      %p67 = por %p65, %p66
      %p68 = scmp.ne.s32.totalorder %s57, %s60
      %p69 = scmp.eq.s32.totalorder %s26, 1
      %p70 = por %p68, %p69
      %p71 = scmp.ne.s32.totalorder %s60, %s61
      %p72 = scmp.eq.s32.totalorder %s26, 0
      %p73 = por %p71, %p72
      %p74 = scmp.ne.s32.totalorder %s60, %s61
      %p75 = scmp.eq.s32.totalorder %s27, 1
      %p76 = por %p74, %p75
      %p78 = scmp.ne.s32.totalorder %s61, %s77
      %p79 = scmp.eq.s32.totalorder %s27, 0
      %p80 = por %p78, %p79
      %s81 = ssub.s32 %s21, %s28
      %p82 = scmp.eq.s32.totalorder %s81, 0
      %s84 = sadd.s32 %s83, 1
      %s85 = scalar_select %p82, %s83, %s84
      %p88 = pneg %p82
      %p89 = scmp.eq.s32.totalorder %s21, 1
      %p90 = por %p88, %p89
      %p91 = scmp.ne.s32.totalorder %s83, %s86
      %p92 = scmp.eq.s32.totalorder %s21, 0
      %p93 = por %p91, %p92
      %p94 = scmp.ne.s32.totalorder %s83, %s86
      %p95 = scmp.eq.s32.totalorder %s26, 1
      %p96 = por %p94, %p95
      %p97 = scmp.ne.s32.totalorder %s86, %s87
      %p98 = scmp.eq.s32.totalorder %s26, 0
      %p99 = por %p97, %p98
      %p100 = scmp.ne.s32.totalorder %s86, %s87
      %p101 = scmp.eq.s32.totalorder %s27, 1
      %p102 = por %p100, %p101
      %p104 = scmp.ne.s32.totalorder %s87, %s103
      %p105 = scmp.eq.s32.totalorder %s27, 0
      %p106 = por %p104, %p105
      %s108 = sadd.s32 %s107, 1
      %p111 = scmp.eq.s32.totalorder %s21, 1
      %p112 = scmp.ne.s32.totalorder %s107, %s109
      %p113 = scmp.eq.s32.totalorder %s21, 0
      %p114 = por %p112, %p113
      %p115 = scmp.ne.s32.totalorder %s107, %s109
      %p116 = scmp.eq.s32.totalorder %s26, 1
      %p117 = por %p115, %p116
      %p118 = scmp.ne.s32.totalorder %s109, %s110
      %p119 = scmp.eq.s32.totalorder %s26, 0
      %p120 = por %p118, %p119
      %p121 = scmp.ne.s32.totalorder %s109, %s110
      %p122 = scmp.eq.s32.totalorder %s27, 1
      %p123 = por %p121, %p122
      %p125 = scmp.ne.s32.totalorder %s110, %s124
      %p126 = scmp.eq.s32.totalorder %s27, 0
      %p127 = por %p125, %p126
      %s129 = sadd.s32 %s128, 1
      %p132 = scmp.eq.s32.totalorder %s21, 1
      %p133 = scmp.ne.s32.totalorder %s128, %s130
      %p134 = scmp.eq.s32.totalorder %s21, 0
      %p135 = por %p133, %p134
      %p136 = scmp.ne.s32.totalorder %s128, %s130
      %p137 = scmp.eq.s32.totalorder %s26, 1
      %p138 = por %p136, %p137
      %p139 = scmp.ne.s32.totalorder %s130, %s131
      %p140 = scmp.eq.s32.totalorder %s26, 0
      %p141 = por %p139, %p140
      %p142 = scmp.ne.s32.totalorder %s130, %s131
      %p143 = scmp.eq.s32.totalorder %s27, 1
      %p144 = por %p142, %p143
      %p146 = scmp.ne.s32.totalorder %s131, %s145
      %p147 = scmp.eq.s32.totalorder %s27, 0
      %p148 = por %p146, %p147
      %s150 = sadd.s32 %s149, 1
      %p153 = scmp.eq.s32.totalorder %s21, 1
      %p154 = scmp.ne.s32.totalorder %s149, %s151
      %p155 = scmp.eq.s32.totalorder %s21, 0
      %p156 = por %p154, %p155
      %p157 = scmp.ne.s32.totalorder %s149, %s151
      %p158 = scmp.eq.s32.totalorder %s26, 1
      %p159 = por %p157, %p158
      %p160 = scmp.ne.s32.totalorder %s151, %s152
      %p161 = scmp.eq.s32.totalorder %s26, 0
      %p162 = por %p160, %p161
      %p163 = scmp.ne.s32.totalorder %s151, %s152
      %p164 = scmp.eq.s32.totalorder %s27, 1
      %p165 = por %p163, %p164
      %p167 = scmp.ne.s32.totalorder %s152, %s166
      %p168 = scmp.eq.s32.totalorder %s27, 0
      %p169 = por %p167, %p168
      %s171 = sadd.s32 %s170, 1
      %p174 = scmp.eq.s32.totalorder %s21, 1
      %p175 = scmp.ne.s32.totalorder %s170, %s172
      %p176 = scmp.eq.s32.totalorder %s21, 0
      %p177 = por %p175, %p176
      %p178 = scmp.ne.s32.totalorder %s170, %s172
      %p179 = scmp.eq.s32.totalorder %s26, 1
      %p180 = por %p178, %p179
      %p181 = scmp.ne.s32.totalorder %s172, %s173
      %p182 = scmp.eq.s32.totalorder %s26, 0
      %p183 = por %p181, %p182
      %p184 = scmp.ne.s32.totalorder %s172, %s173
      %p185 = scmp.eq.s32.totalorder %s27, 1
      %p186 = por %p184, %p185
      %p188 = scmp.ne.s32.totalorder %s173, %s187
      %p189 = scmp.eq.s32.totalorder %s27, 0
      %p190 = por %p188, %p189
      %s191 = ssub.s32 %s21, %s28
      %p192 = scmp.eq.s32.totalorder %s191, 0
      %s194 = sadd.s32 %s193, 1
      %s195 = scalar_select %p192, %s193, %s194
      %p198 = pneg %p192
      %p199 = scmp.eq.s32.totalorder %s21, 1
      %p200 = por %p198, %p199
      %p201 = scmp.ne.s32.totalorder %s193, %s196
      %p202 = scmp.eq.s32.totalorder %s21, 0
      %p203 = por %p201, %p202
      %p204 = scmp.ne.s32.totalorder %s193, %s196
      %p205 = scmp.eq.s32.totalorder %s26, 1
      %p206 = por %p204, %p205
      %p207 = scmp.ne.s32.totalorder %s196, %s197
      %p208 = scmp.eq.s32.totalorder %s26, 0
      %p209 = por %p207, %p208
      %p210 = scmp.ne.s32.totalorder %s196, %s197
      %p211 = scmp.eq.s32.totalorder %s27, 1
      %p212 = por %p210, %p211
      %p214 = scmp.ne.s32.totalorder %s197, %s213
      %p215 = scmp.eq.s32.totalorder %s27, 0
      %p216 = por %p214, %p215
      %s217 = ssub.s32 %s21, %s28
      %p218 = scmp.eq.s32.totalorder %s217, 0
      %s220 = sadd.s32 %s219, 1
      %s221 = scalar_select %p218, %s219, %s220
      %p224 = pneg %p218
      %p225 = scmp.eq.s32.totalorder %s21, 1
      %p226 = por %p224, %p225
      %p227 = scmp.ne.s32.totalorder %s219, %s222
      %p228 = scmp.eq.s32.totalorder %s21, 0
      %p229 = por %p227, %p228
      %p230 = scmp.ne.s32.totalorder %s219, %s222
      %p231 = scmp.eq.s32.totalorder %s26, 1
      %p232 = por %p230, %p231
      %p233 = scmp.ne.s32.totalorder %s222, %s223
      %p234 = scmp.eq.s32.totalorder %s26, 0
      %p235 = por %p233, %p234
      %p236 = scmp.ne.s32.totalorder %s222, %s223
      %p237 = scmp.eq.s32.totalorder %s27, 1
      %p238 = por %p236, %p237
      %p240 = scmp.ne.s32.totalorder %s223, %s239
      %p241 = scmp.eq.s32.totalorder %s27, 0
      %p242 = por %p240, %p241
      %p243 = scmp.le.s32.totalorder 1, %s21
      %p244 = scmp.lt.s32.totalorder %s21, 3
      %p245 = pnand %p243, %p244
      %p246 = pneg %p245
      // Predicated region
      $region9: #{tpu_custom_call.1} parent=5 // pred_check
        _
      $region10: #{tpu_custom_call.1} parent=5 // pred_check_branch
        %248 = sbr.rel (%p245) target = $region12
      $region11: #{tpu_custom_call.1} parent=5 // pred_region
        %s249 = ssub.s32 %s21, 1
        // Predicated region
        $region13: #{tpu_custom_call.1} parent=11 // pred_check
          %p250 = pneg %p120
        $region14: #{tpu_custom_call.1} parent=11 // pred_check_branch
          %252 = sbr.rel (%p250) target = $region16
        $region15: #{tpu_custom_call.1} parent=11 // pred_region
          %s254 = ssub.s32 512, 512
          %255 = vsyncadd [#allocation6], %s254
          %s256 = sshll.u32 [#allocation5], 4
          %s257 = int_to_ptr.vmem [resolvable:$true] %s256
          %262 = dma.hbm_to_vmem [thread:$0]  %s3, 512, %s257, [#allocation6], 128, 128, 8
        $region16: #{tpu_custom_call.1} parent=11 // pred_fallthru
          _
        // Predicated region
        $region17: #{tpu_custom_call.1} parent=11 // pred_check
          %p263 = pneg %p141
        $region18: #{tpu_custom_call.1} parent=11 // pred_check_branch
          %265 = sbr.rel (%p263) target = $region20
        $region19: #{tpu_custom_call.1} parent=11 // pred_region
          _
        $region20: #{tpu_custom_call.1} parent=11 // pred_fallthru
          _
        // Predicated region
        $region21: #{tpu_custom_call.1} parent=11 // pred_check
          %p266 = pneg %p162
        $region22: #{tpu_custom_call.1} parent=11 // pred_check_branch
          %268 = sbr.rel (%p266) target = $region24
        $region23: #{tpu_custom_call.1} parent=11 // pred_region
          _
        $region24: #{tpu_custom_call.1} parent=11 // pred_fallthru
          _
        // Predicated region
        $region25: #{tpu_custom_call.1} parent=11 // pred_check
          %p269 = pneg %p183
        $region26: #{tpu_custom_call.1} parent=11 // pred_check_branch
          %271 = sbr.rel (%p269) target = $region28
        $region27: #{tpu_custom_call.1} parent=11 // pred_region
          _
        $region28: #{tpu_custom_call.1} parent=11 // pred_fallthru
          _
      $region12: #{tpu_custom_call.1} parent=5 // pred_fallthru
        _
      %p272 = scmp.lt.s32.totalorder %s21, 2
      // Predicated region
      $region29: #{tpu_custom_call.1} parent=5 // pred_check
        %p273 = pneg %p272
      $region30: #{tpu_custom_call.1} parent=5 // pred_check_branch
        %275 = sbr.rel (%p273) target = $region32
      $region31: #{tpu_custom_call.1} parent=5 // pred_region
        // Predicated region
        $region33: #{tpu_custom_call.1} parent=31 // pred_check
          %p276 = pneg %p41
        $region34: #{tpu_custom_call.1} parent=31 // pred_check_branch
          %278 = sbr.rel (%p276) target = $region36
        $region35: #{tpu_custom_call.1} parent=31 // pred_region
          %p279 = scmp.lt.s32.totalorder %s21, 1
          %s280 = scalar_select %p279, %s21, 1
          %s281 = smul.addr %s280, 8
          %s282 = scalar_lea.vmem %s0, %s281
        $region36: #{tpu_custom_call.1} parent=31 // pred_fallthru
          _
        // Predicated region
        $region37: #{tpu_custom_call.1} parent=31 // pred_check
          %p283 = pneg %p67
        $region38: #{tpu_custom_call.1} parent=31 // pred_check_branch
          %285 = sbr.rel (%p283) target = $region40
        $region39: #{tpu_custom_call.1} parent=31 // pred_region
          %s286 = sand.u32 %s57, 1
          %s287 = scalar_lea.sflag [#allocation4], %s286
          %s288 = sand.u32 %s57, 1
          %s289 = smul.addr %s288, 64
          %s290 = scalar_lea.vmem [#allocation3], %s289
          %s291 = smul.u32 8, %s21
          %s293 = ssub.s32 1024, 1024
          %294 = vsyncadd %s287, %s293
          %s295 = smul.addr %s291, 128
          %s296 = scalar_lea.hbm %s1, %s295
          %s297 = sshll.u32 %s290, 4
          %s298 = int_to_ptr.vmem [resolvable:$true] %s297
          %303 = dma.hbm_to_vmem [thread:$0]  %s296, 1024, %s298, %s287, 128, 128, 8
        $region40: #{tpu_custom_call.1} parent=31 // pred_fallthru
          _
        // Predicated region
        $region41: #{tpu_custom_call.1} parent=31 // pred_check
          %p304 = pneg %p93
        $region42: #{tpu_custom_call.1} parent=31 // pred_check_branch
          %306 = sbr.rel (%p304) target = $region44
        $region43: #{tpu_custom_call.1} parent=31 // pred_region
          %p307 = scmp.lt.s32.totalorder %s21, 1
          %s308 = scalar_select %p307, %s21, 1
          %s309 = smul.addr %s308, 8
          %s310 = scalar_lea.vmem %s2, %s309
        $region44: #{tpu_custom_call.1} parent=31 // pred_fallthru
          _
      $region32: #{tpu_custom_call.1} parent=5 // pred_fallthru
        _
      %p311 = scmp.le.s32.totalorder 1, %s21
      %p312 = scmp.lt.s32.totalorder %s21, 3
      %p313 = pnand %p311, %p312
      %p314 = pneg %p313
      // Predicated region
      $region45: #{tpu_custom_call.1} parent=5 // pred_check
        _
      $region46: #{tpu_custom_call.1} parent=5 // pred_check_branch
        %316 = sbr.rel (%p313) target = $region48
      $region47: #{tpu_custom_call.1} parent=5 // pred_region
        %s317 = ssub.s32 %s21, 1
        %s318 = sand.u32 %s60, 1
        %s319 = scalar_lea.sflag [#allocation4], %s318
        %s320 = sand.u32 %s60, 1
        %s321 = smul.addr %s320, 64
        %s322 = scalar_lea.vmem [#allocation3], %s321
        // Predicated region
        $region49: #{tpu_custom_call.1} parent=47 // pred_check
          %p323 = pneg %p73
        $region50: #{tpu_custom_call.1} parent=47 // pred_check_branch
          %325 = sbr.rel (%p323) target = $region52
        $region51: #{tpu_custom_call.1} parent=47 // pred_region
          %326 = dma.done %s319, 1024
        $region52: #{tpu_custom_call.1} parent=47 // pred_fallthru
          _
        // Predicated region
        $region53: #{tpu_custom_call.1} parent=47 // pred_check
          %p327 = pneg %p120
        $region54: #{tpu_custom_call.1} parent=47 // pred_check_branch
          %329 = sbr.rel (%p327) target = $region56
        $region55: #{tpu_custom_call.1} parent=47 // pred_region
          %330 = dma.done [#allocation6], 512
        $region56: #{tpu_custom_call.1} parent=47 // pred_fallthru
          _
        %p331 = scmp.lt.s32.totalorder %s26, 1
        %s332 = scalar_select %p331, %s26, 1
        %s333 = smul.addr %s332, 8
        %s334 = scalar_lea.vmem %s0, %s333
        %p335 = pneg %p47
        %p336 = pneg %p44
        %s337 = sand.u32 %s60, 1
        %s338 = scalar_lea.sflag [#allocation4], %s337
        %s339 = sand.u32 %s60, 1
        %s340 = smul.addr %s339, 64
        %s341 = scalar_lea.vmem [#allocation3], %s340
        %p342 = pneg %p73
        %p343 = pneg %p70
        %p344 = scmp.lt.s32.totalorder %s26, 1
        %s345 = scalar_select %p344, %s26, 1
        %s346 = smul.addr %s345, 8
        %s347 = scalar_lea.vmem %s2, %s346
        %p348 = pneg %p99
        %p349 = pneg %p96
        %p350 = pneg %p120
        %p351 = pneg %p117
        %p352 = pneg %p141
        %p353 = pneg %p138
        %p354 = pneg %p162
        %p355 = pneg %p159
        %p356 = pneg %p183
        %p357 = pneg %p180
        %p358 = pneg %p209
        %p359 = pneg %p206
        %p360 = scmp.lt.s32.totalorder %s26, 1
        %s361 = scalar_select %p360, %s26, 1
        %s362 = smul.addr %s361, 8
        %s363 = scalar_lea.vmem %s7, %s362
        %p364 = pneg %p235
        %p365 = pneg %p232
        %p366 = scmp.lt.s32.totalorder %s26, 1
        %s367 = scalar_select %p366, %s26, 1
        %s368 = smul.addr %s367, 8
        %s369 = scalar_lea.vmem %s8, %s368
        %p370 = scmp.lt.s32.totalorder %s26, 1
        %s371 = scalar_select %p370, %s26, 1
        %s372 = smul.addr %s371, 8
        %s373 = scalar_lea.vmem %s0, %s372
        %s374 = smul.u32 8, %s26
        %p375 = scmp.lt.s32.totalorder %s26, 1
        %s376 = scalar_select %p375, %s26, 1
        %s377 = smul.addr %s376, 8
        %s378 = scalar_lea.vmem %s2, %s377
        %p379 = scmp.lt.s32.totalorder %s26, 1
        %s380 = scalar_select %p379, %s26, 1
        %s381 = smul.addr %s380, 8
        %s382 = scalar_lea.vmem %s7, %s381
        %p383 = scmp.lt.s32.totalorder %s26, 1
        %s384 = scalar_select %p383, %s26, 1
        %s385 = smul.addr %s384, 8
        %s386 = scalar_lea.vmem %s8, %s385
        %v387 = vld [vmem:[%s373] sm:$0xff]
        %v388 = vld [vmem:[%s322] sm:$0xff]
        %v389 = vld [vmem:[%s322 + $0x8] sm:$0xff]
        %v390 = vld [vmem:[%s322 + $0x10] sm:$0xff]
        %v391 = vld [vmem:[%s322 + $0x18] sm:$0xff]
        %v392 = vld [vmem:[%s322 + $0x20] sm:$0xff]
        %v393 = vld [vmem:[%s322 + $0x28] sm:$0xff]
        %v394 = vld [vmem:[%s322 + $0x30] sm:$0xff]
        %v395 = vld [vmem:[%s322 + $0x38] sm:$0xff]
        %v396 = vld [vmem:[#allocation5] sm:$0xff]
        %v397 = vld [vmem:[#allocation5 + $0x8] sm:$0xff]
        %v398 = vld [vmem:[#allocation5 + $0x10] sm:$0xff]
        %v399 = vld [vmem:[#allocation5 + $0x18] sm:$0xff]
        %v400 = vld [vmem:[%s4] sm:$0x1]
        %v402 = vlaneseq
        %v403 = vshrl.u32 %v402, 7
        %v404 = vsub.s32 0, %v403
        %v405 = vrot.slane %v400, %v404
        %vm407 = vcmask 261120
        %v409 = vsel %vm407, %v387, 0
        %411 = vmatprep.subr.mxu0 0.0
        %412 = vmatpush1.msra.mxu0 0.0
        %413 = vmatprep.subr.mxu0 0.0
        %414 = vmatpush1.msra.mxu0 0.0
        %415 = vmatprep.subr.mxu0 0.0
        %416 = vmatpush1.msra.mxu0 0.0
        %417 = vmatprep.subr.mxu0 0.0
        %418 = vmatpush1.msra.mxu0 0.0
        %419 = vmatprep.subr.mxu0 0.0
        %420 = vmatpush1.msra.mxu0 0.0
        %421 = vmatprep.subr.mxu0 0.0
        %422 = vmatpush1.msra.mxu0 0.0
        %423 = vmatprep.subr.mxu0 0.0
        %424 = vmatpush1.msra.mxu0 0.0
        %425 = vmatprep.subr.mxu0 0.0
        %426 = vmatpush1.msra.mxu0 0.0
        %427 = vmatprep.subr.mxu0 0.0
        %428 = vmatpush1.msra.mxu0 0.0
        %429 = vmatprep.subr.mxu0 0.0
        %430 = vmatpush1.msra.mxu0 0.0
        %431 = vmatprep.subr.mxu0 0.0
        %432 = vmatpush1.msra.mxu0 0.0
        %433 = vmatprep.subr.mxu0 0.0
        %434 = vmatpush1.msra.mxu0 0.0
        %435 = vmatprep.subr.mxu0 0.0
        %436 = vmatpush1.msra.mxu0 %v399
        %437 = vmatprep.subr.mxu0 0.0
        %438 = vmatpush1.msra.mxu0 %v398
        %439 = vmatprep.subr.mxu0 0.0
        %440 = vmatpush1.msra.mxu0 %v397
        %441 = vmatprep.subr.mxu0 0.0
        %442 = vmatpush1.msra.mxu0 %v396
        %443 = vmatprep.subr.mxu0 0.0
        %444 = vmatpush2.msra.mxu0 0.0
        %445 = vmatprep.subr.mxu0 0.0
        %446 = vmatpush2.msra.mxu0 0.0
        %447 = vmatprep.subr.mxu0 0.0
        %448 = vmatpush2.msra.mxu0 0.0
        %449 = vmatprep.subr.mxu0 0.0
        %450 = vmatpush2.msra.mxu0 0.0
        %451 = vmatprep.subr.mxu0 0.0
        %452 = vmatpush2.msra.mxu0 0.0
        %453 = vmatprep.subr.mxu0 0.0
        %454 = vmatpush2.msra.mxu0 0.0
        %455 = vmatprep.subr.mxu0 0.0
        %456 = vmatpush2.msra.mxu0 0.0
        %457 = vmatprep.subr.mxu0 0.0
        %458 = vmatpush2.msra.mxu0 0.0
        %459 = vmatprep.subr.mxu0 0.0
        %460 = vmatpush2.msra.mxu0 0.0
        %461 = vmatprep.subr.mxu0 0.0
        %462 = vmatpush2.msra.mxu0 0.0
        %463 = vmatprep.subr.mxu0 0.0
        %464 = vmatpush2.msra.mxu0 0.0
        %465 = vmatprep.subr.mxu0 0.0
        %466 = vmatpush2.msra.mxu0 0.0
        %467 = vmatprep.subr.mxu0 0.0
        %468 = vmatpush2.msra.mxu0 0.0
        %469 = vmatprep.subr.mxu0 0.0
        %470 = vmatpush2.msra.mxu0 0.0
        %471 = vmatprep.subr.mxu0 0.0
        %472 = vmatpush2.msra.mxu0 0.0
        %473 = vmatprep.subr.mxu0 0.0
        %474 = vmatpush2.msra.mxu0 0.0
        %475 = vmatprep.mubr.f32.mxu0 0.0
        %476 = vmatmul.mubr.f32.gmra.mxu0 %v409
        %v477 = vpop.f32.mrf.mxu0
        %v478 = vadd.f32 %v405, %v477
        %v479 = vpop.f32.mrf.mxu0
        %480 = vdwg.mxu0
        %v482 = vcombine.high %v478, %v478
        %v484 = vunpack.c.l.s4 1966171168
        %v485 = vunpack.c.0.s8 %v484
        %v486 = vlaneseq
        %v487 = vshrl.u32 %v486, 7
        %v488 = vsub.s32 %v485, %v487
        %v489 = vrot.slane %v478, %v488
        %v491 = vunpack.c.l.s4 1966171168
        %v492 = vunpack.c.0.s8 %v491
        %v493 = vlaneseq
        %v494 = vshrl.u32 %v493, 7
        %v495 = vsub.s32 %v492, %v494
        %v496 = vrot.slane %v482, %v495
        %v497 = vcombine.high %v489, %v489
        %v498 = vcombine.high %v496, %v496
        %v500 = vunpack.c.l.s4 1966171168
        %v501 = vunpack.c.0.s8 %v500
        %v502 = vlaneseq
        %v503 = vshrl.u32 %v502, 7
        %v504 = vsub.s32 %v501, %v503
        %v505 = vrot.slane %v489, %v504
        %v507 = vunpack.c.l.s4 1966171168
        %v508 = vunpack.c.0.s8 %v507
        %v509 = vlaneseq
        %v510 = vshrl.u32 %v509, 7
        %v511 = vsub.s32 %v508, %v510
        %v512 = vrot.slane %v496, %v511
        %v514 = vunpack.c.l.s4 1966171168
        %v515 = vunpack.c.0.s8 %v514
        %v516 = vlaneseq
        %v517 = vshrl.u32 %v516, 7
        %v518 = vsub.s32 %v515, %v517
        %v519 = vrot.slane %v497, %v518
        %v521 = vunpack.c.l.s4 1966171168
        %v522 = vunpack.c.0.s8 %v521
        %v523 = vlaneseq
        %v524 = vshrl.u32 %v523, 7
        %v525 = vsub.s32 %v522, %v524
        %v526 = vrot.slane %v498, %v525
        %v527 = vcombine.high %v505, %v505
        %v528 = vcombine.high %v512, %v512
        %v529 = vcombine.high %v519, %v519
        %v530 = vcombine.high %v526, %v526
        %v531 = vlaneseq
        %v532 = vshrl.u32 %v531, 7
        %v533 = vsub.s32 0, %v532
        %v534 = vrot.slane %v505, %v533
        %v535 = vlaneseq
        %v536 = vshrl.u32 %v535, 7
        %v537 = vsub.s32 0, %v536
        %v538 = vrot.slane %v519, %v537
        %v539 = vlaneseq
        %v540 = vshrl.u32 %v539, 7
        %v541 = vsub.s32 0, %v540
        %v542 = vrot.slane %v527, %v541
        %v543 = vlaneseq
        %v544 = vshrl.u32 %v543, 7
        %v545 = vsub.s32 0, %v544
        %v546 = vrot.slane %v529, %v545
        %v547 = vlaneseq
        %v548 = vshrl.u32 %v547, 7
        %v549 = vsub.s32 0, %v548
        %v550 = vrot.slane %v512, %v549
        %v551 = vlaneseq
        %v552 = vshrl.u32 %v551, 7
        %v553 = vsub.s32 0, %v552
        %v554 = vrot.slane %v526, %v553
        %v555 = vlaneseq
        %v556 = vshrl.u32 %v555, 7
        %v557 = vsub.s32 0, %v556
        %v558 = vrot.slane %v528, %v557
        %v559 = vlaneseq
        %v560 = vshrl.u32 %v559, 7
        %v561 = vsub.s32 0, %v560
        %v562 = vrot.slane %v530, %v561
        %v571 = vmul.f32 %v534, %v388
        %v572 = vmul.f32 %v538, %v389
        %v573 = vmul.f32 %v542, %v390
        %v574 = vmul.f32 %v546, %v391
        %v575 = vmul.f32 %v550, %v392
        %v576 = vmul.f32 %v554, %v393
        %v577 = vmul.f32 %v558, %v394
        %v578 = vmul.f32 %v562, %v395
        %v579 = vsel %vm407, %v571, 0.0
        %580 = vadd.xlane.f32.xlu0 %v579
        %v581 = vpop.xlane.xlu0 %580
        %v582 = vsel %vm407, %v572, 0.0
        %583 = vadd.xlane.f32.xlu0 %v582
        %v584 = vpop.xlane.xlu0 %583
        %v585 = vsel %vm407, %v573, 0.0
        %586 = vadd.xlane.f32.xlu0 %v585
        %v587 = vpop.xlane.xlu0 %586
        %v588 = vsel %vm407, %v574, 0.0
        %589 = vadd.xlane.f32.xlu0 %v588
        %v590 = vpop.xlane.xlu0 %589
        %v591 = vsel %vm407, %v575, 0.0
        %592 = vadd.xlane.f32.xlu0 %v591
        %v593 = vpop.xlane.xlu0 %592
        %v594 = vsel %vm407, %v576, 0.0
        %595 = vadd.xlane.f32.xlu0 %v594
        %v596 = vpop.xlane.xlu0 %595
        %v597 = vsel %vm407, %v577, 0.0
        %598 = vadd.xlane.f32.xlu0 %v597
        %v599 = vpop.xlane.xlu0 %598
        %v600 = vsel %vm407, %v578, 0.0
        %601 = vadd.xlane.f32.xlu0 %v600
        %v602 = vpop.xlane.xlu0 %601
        %603 = vset.pattern.permute.xlu0 32
        %604 = vperm.xlu0 %603, %v478
        %v605 = vpop.permute.xlu0 %604
        %v606 = vlaneseq
        %v607 = vshrl.u32 %v606, 7
        %v608 = vsub.s32 0, %v607
        %v609 = vrot.slane %v605, %v608
        %v610 = vlaneseq
        %v611 = vshrl.u32 %v610, 7
        %v612 = vsub.s32 1, %v611
        %v613 = vrot.slane %v605, %v612
        %v614 = vlaneseq
        %v615 = vshrl.u32 %v614, 7
        %v616 = vsub.s32 2, %v615
        %v617 = vrot.slane %v605, %v616
        %v618 = vlaneseq
        %v619 = vshrl.u32 %v618, 7
        %v620 = vsub.s32 3, %v619
        %v621 = vrot.slane %v605, %v620
        %v622 = vlaneseq
        %v623 = vshrl.u32 %v622, 7
        %v624 = vsub.s32 4, %v623
        %v625 = vrot.slane %v605, %v624
        %v626 = vlaneseq
        %v627 = vshrl.u32 %v626, 7
        %v628 = vsub.s32 5, %v627
        %v629 = vrot.slane %v605, %v628
        %v630 = vlaneseq
        %v631 = vshrl.u32 %v630, 7
        %v632 = vsub.s32 6, %v631
        %v633 = vrot.slane %v605, %v632
        %v634 = vlaneseq
        %v635 = vshrl.u32 %v634, 7
        %v636 = vsub.s32 7, %v635
        %v637 = vrot.slane %v605, %v636
        %v646 = vadd.f32 %v581, %v609
        %v647 = vadd.f32 %v584, %v613
        %v648 = vadd.f32 %v587, %v617
        %v649 = vadd.f32 %v590, %v621
        %v650 = vadd.f32 %v593, %v625
        %v651 = vadd.f32 %v596, %v629
        %v652 = vadd.f32 %v599, %v633
        %v653 = vadd.f32 %v602, %v637
        %v654 = vtanh.pop %v646
        %v655 = vtanh.pop %v647
        %v656 = vtanh.pop %v648
        %v657 = vtanh.pop %v649
        %v658 = vtanh.pop %v650
        %v659 = vtanh.pop %v651
        %v660 = vtanh.pop %v652
        %v661 = vtanh.pop %v653
        %v662 = vmul.f32 %v654, 10.0
        %v663 = vmul.f32 %v655, 10.0
        %v664 = vmul.f32 %v656, 10.0
        %v665 = vmul.f32 %v657, 10.0
        %v666 = vmul.f32 %v658, 10.0
        %v667 = vmul.f32 %v659, 10.0
        %v668 = vmul.f32 %v660, 10.0
        %v669 = vmul.f32 %v661, 10.0
        %v670 = vld [vmem:[%s378] sm:$0xff]
        %v672 = vlaneseq
        %v673 = vshrl.u32 %v672, 7
        %v674 = vsub.s32 0, %v673
        %v675 = vrot.slane %v670, %v674
        %677 = vbcast.lane.b32.xlu0 %v675, 256
        %v678 = vpop.permute.xlu0 %677
        %v679 = vlaneseq
        %v680 = vshrl.u32 %v679, 7
        %v681 = vsub.s32 1, %v680
        %v682 = vrot.slane %v670, %v681
        %684 = vbcast.lane.b32.xlu0 %v682, 256
        %v685 = vpop.permute.xlu0 %684
        %v686 = vlaneseq
        %v687 = vshrl.u32 %v686, 7
        %v688 = vsub.s32 2, %v687
        %v689 = vrot.slane %v670, %v688
        %691 = vbcast.lane.b32.xlu0 %v689, 256
        %v692 = vpop.permute.xlu0 %691
        %v693 = vlaneseq
        %v694 = vshrl.u32 %v693, 7
        %v695 = vsub.s32 3, %v694
        %v696 = vrot.slane %v670, %v695
        %698 = vbcast.lane.b32.xlu0 %v696, 256
        %v699 = vpop.permute.xlu0 %698
        %v700 = vlaneseq
        %v701 = vshrl.u32 %v700, 7
        %v702 = vsub.s32 4, %v701
        %v703 = vrot.slane %v670, %v702
        %705 = vbcast.lane.b32.xlu0 %v703, 256
        %v706 = vpop.permute.xlu0 %705
        %v707 = vlaneseq
        %v708 = vshrl.u32 %v707, 7
        %v709 = vsub.s32 5, %v708
        %v710 = vrot.slane %v670, %v709
        %712 = vbcast.lane.b32.xlu0 %v710, 256
        %v713 = vpop.permute.xlu0 %712
        %v714 = vlaneseq
        %v715 = vshrl.u32 %v714, 7
        %v716 = vsub.s32 6, %v715
        %v717 = vrot.slane %v670, %v716
        %719 = vbcast.lane.b32.xlu0 %v717, 256
        %v720 = vpop.permute.xlu0 %719
        %v721 = vlaneseq
        %v722 = vshrl.u32 %v721, 7
        %v723 = vsub.s32 7, %v722
        %v724 = vrot.slane %v670, %v723
        %726 = vbcast.lane.b32.xlu0 %v724, 256
        %v727 = vpop.permute.xlu0 %726
        %v736 = vadd.f32 %v662, %v678
        %v737 = vadd.f32 %v663, %v685
        %v738 = vadd.f32 %v664, %v692
        %v739 = vadd.f32 %v665, %v699
        %v740 = vadd.f32 %v666, %v706
        %v741 = vadd.f32 %v667, %v713
        %v742 = vadd.f32 %v668, %v720
        %v743 = vadd.f32 %v669, %v727
        %752 = vset.pattern.permute.xlu0 0
        %753 = vperm.xlu0 %752, %v736
        %v754 = vpop.permute.xlu0 %753
        %755 = vset.pattern.permute.xlu0 0
        %756 = vperm.xlu0 %755, %v737
        %v757 = vpop.permute.xlu0 %756
        %758 = vset.pattern.permute.xlu0 0
        %759 = vperm.xlu0 %758, %v738
        %v760 = vpop.permute.xlu0 %759
        %761 = vset.pattern.permute.xlu0 0
        %762 = vperm.xlu0 %761, %v739
        %v763 = vpop.permute.xlu0 %762
        %764 = vset.pattern.permute.xlu0 0
        %765 = vperm.xlu0 %764, %v740
        %v766 = vpop.permute.xlu0 %765
        %767 = vset.pattern.permute.xlu0 0
        %768 = vperm.xlu0 %767, %v741
        %v769 = vpop.permute.xlu0 %768
        %770 = vset.pattern.permute.xlu0 0
        %771 = vperm.xlu0 %770, %v742
        %v772 = vpop.permute.xlu0 %771
        %773 = vset.pattern.permute.xlu0 0
        %774 = vperm.xlu0 %773, %v743
        %v775 = vpop.permute.xlu0 %774
        %v776 = vlaneseq
        %v777 = vand.u32 %v776, 127
        %v778 = vlaneseq
        %v779 = vshrl.u32 %v778, 7
        %v780 = vsub.s32 %v777, %v779
        %v781 = vrot.slane %v754, %v780
        %v782 = vlaneseq
        %v783 = vshrl.u32 %v782, 7
        %v784 = vsub.s32 %v777, %v783
        %v785 = vrot.slane %v757, %v784
        %v786 = vlaneseq
        %v787 = vshrl.u32 %v786, 7
        %v788 = vsub.s32 %v777, %v787
        %v789 = vrot.slane %v760, %v788
        %v790 = vlaneseq
        %v791 = vshrl.u32 %v790, 7
        %v792 = vsub.s32 %v777, %v791
        %v793 = vrot.slane %v763, %v792
        %v794 = vlaneseq
        %v795 = vshrl.u32 %v794, 7
        %v796 = vsub.s32 %v777, %v795
        %v797 = vrot.slane %v766, %v796
        %v798 = vlaneseq
        %v799 = vshrl.u32 %v798, 7
        %v800 = vsub.s32 %v777, %v799
        %v801 = vrot.slane %v769, %v800
        %v802 = vlaneseq
        %v803 = vshrl.u32 %v802, 7
        %v804 = vsub.s32 %v777, %v803
        %v805 = vrot.slane %v772, %v804
        %v806 = vlaneseq
        %v807 = vshrl.u32 %v806, 7
        %v808 = vsub.s32 %v777, %v807
        %v809 = vrot.slane %v775, %v808
        %vm810 = vcmask 1041409
        %v811 = vsel %vm810, %v785, %v781
        %vm812 = vcmask 1042434
        %v813 = vsel %vm812, %v789, %v811
        %vm814 = vcmask 1043459
        %v815 = vsel %vm814, %v793, %v813
        %vm816 = vcmask 1044484
        %v817 = vsel %vm816, %v797, %v815
        %vm818 = vcmask 1045509
        %v819 = vsel %vm818, %v801, %v817
        %vm820 = vcmask 1046534
        %v821 = vsel %vm820, %v805, %v819
        %vm822 = vcmask 1047559
        %v823 = vsel %vm822, %v809, %v821
        %vm825 = vcmask 64512
        %v826 = vsel %vm825, %v823, -inf
        %827 = vmax.xlane.f32.xlu0 %v826
        %v828 = vpop.xlane.xlu0 %827
        %v830 = vlaneseq
        %v831 = vshrl.u32 %v830, 7
        %v832 = vsub.s32 0, %v831
        %v833 = vrot.slane %v828, %v832
        %v834 = vlaneseq
        %v835 = vshrl.u32 %v834, 7
        %v836 = vsub.s32 1, %v835
        %v837 = vrot.slane %v828, %v836
        %v838 = vlaneseq
        %v839 = vshrl.u32 %v838, 7
        %v840 = vsub.s32 2, %v839
        %v841 = vrot.slane %v828, %v840
        %v842 = vlaneseq
        %v843 = vshrl.u32 %v842, 7
        %v844 = vsub.s32 3, %v843
        %v845 = vrot.slane %v828, %v844
        %v846 = vlaneseq
        %v847 = vshrl.u32 %v846, 7
        %v848 = vsub.s32 4, %v847
        %v849 = vrot.slane %v828, %v848
        %v850 = vlaneseq
        %v851 = vshrl.u32 %v850, 7
        %v852 = vsub.s32 5, %v851
        %v853 = vrot.slane %v828, %v852
        %v854 = vlaneseq
        %v855 = vshrl.u32 %v854, 7
        %v856 = vsub.s32 6, %v855
        %v857 = vrot.slane %v828, %v856
        %v858 = vlaneseq
        %v859 = vshrl.u32 %v858, 7
        %v860 = vsub.s32 7, %v859
        %v861 = vrot.slane %v828, %v860
        %v870 = vsub.f32 %v736, %v833
        %v871 = vsub.f32 %v737, %v837
        %v872 = vsub.f32 %v738, %v841
        %v873 = vsub.f32 %v739, %v845
        %v874 = vsub.f32 %v740, %v849
        %v875 = vsub.f32 %v741, %v853
        %v876 = vsub.f32 %v742, %v857
        %v877 = vsub.f32 %v743, %v861
        %v878 = vmul.f32 %v870, 1.442695
        %v879 = vpow.pop %v878
        %v880 = vmul.f32 %v871, 1.442695
        %v881 = vpow.pop %v880
        %v882 = vmul.f32 %v872, 1.442695
        %v883 = vpow.pop %v882
        %v884 = vmul.f32 %v873, 1.442695
        %v885 = vpow.pop %v884
        %v886 = vmul.f32 %v874, 1.442695
        %v887 = vpow.pop %v886
        %v888 = vmul.f32 %v875, 1.442695
        %v889 = vpow.pop %v888
        %v890 = vmul.f32 %v876, 1.442695
        %v891 = vpow.pop %v890
        %v892 = vmul.f32 %v877, 1.442695
        %v893 = vpow.pop %v892
        %902 = vset.pattern.permute.xlu0 0
        %903 = vperm.xlu0 %902, %v879
        %v904 = vpop.permute.xlu0 %903
        %905 = vset.pattern.permute.xlu0 0
        %906 = vperm.xlu0 %905, %v881
        %v907 = vpop.permute.xlu0 %906
        %908 = vset.pattern.permute.xlu0 0
        %909 = vperm.xlu0 %908, %v883
        %v910 = vpop.permute.xlu0 %909
        %911 = vset.pattern.permute.xlu0 0
        %912 = vperm.xlu0 %911, %v885
        %v913 = vpop.permute.xlu0 %912
        %914 = vset.pattern.permute.xlu0 0
        %915 = vperm.xlu0 %914, %v887
        %v916 = vpop.permute.xlu0 %915
        %917 = vset.pattern.permute.xlu0 0
        %918 = vperm.xlu0 %917, %v889
        %v919 = vpop.permute.xlu0 %918
        %920 = vset.pattern.permute.xlu0 0
        %921 = vperm.xlu0 %920, %v891
        %v922 = vpop.permute.xlu0 %921
        %923 = vset.pattern.permute.xlu0 0
        %924 = vperm.xlu0 %923, %v893
        %v925 = vpop.permute.xlu0 %924
        %v926 = vlaneseq
        %v927 = vshrl.u32 %v926, 7
        %v928 = vsub.s32 %v777, %v927
        %v929 = vrot.slane %v904, %v928
        %v930 = vlaneseq
        %v931 = vshrl.u32 %v930, 7
        %v932 = vsub.s32 %v777, %v931
        %v933 = vrot.slane %v907, %v932
        %v934 = vlaneseq
        %v935 = vshrl.u32 %v934, 7
        %v936 = vsub.s32 %v777, %v935
        %v937 = vrot.slane %v910, %v936
        %v938 = vlaneseq
        %v939 = vshrl.u32 %v938, 7
        %v940 = vsub.s32 %v777, %v939
        %v941 = vrot.slane %v913, %v940
        %v942 = vlaneseq
        %v943 = vshrl.u32 %v942, 7
        %v944 = vsub.s32 %v777, %v943
        %v945 = vrot.slane %v916, %v944
        %v946 = vlaneseq
        %v947 = vshrl.u32 %v946, 7
        %v948 = vsub.s32 %v777, %v947
        %v949 = vrot.slane %v919, %v948
        %v950 = vlaneseq
        %v951 = vshrl.u32 %v950, 7
        %v952 = vsub.s32 %v777, %v951
        %v953 = vrot.slane %v922, %v952
        %v954 = vlaneseq
        %v955 = vshrl.u32 %v954, 7
        %v956 = vsub.s32 %v777, %v955
        %v957 = vrot.slane %v925, %v956
        %v958 = vsel %vm810, %v933, %v929
        %v959 = vsel %vm812, %v937, %v958
        %v960 = vsel %vm814, %v941, %v959
        %v961 = vsel %vm816, %v945, %v960
        %v962 = vsel %vm818, %v949, %v961
        %v963 = vsel %vm820, %v953, %v962
        %v964 = vsel %vm822, %v957, %v963
        %v966 = vsel %vm825, %v964, 0.0
        %967 = vadd.xlane.f32.xlu0 %v966
        %v968 = vpop.xlane.xlu0 %967
        %v969 = vrcp.pop %v968
        %v971 = vlaneseq
        %v972 = vshrl.u32 %v971, 7
        %v973 = vsub.s32 0, %v972
        %v974 = vrot.slane %v969, %v973
        %v975 = vlaneseq
        %v976 = vshrl.u32 %v975, 7
        %v977 = vsub.s32 1, %v976
        %v978 = vrot.slane %v969, %v977
        %v979 = vlaneseq
        %v980 = vshrl.u32 %v979, 7
        %v981 = vsub.s32 2, %v980
        %v982 = vrot.slane %v969, %v981
        %v983 = vlaneseq
        %v984 = vshrl.u32 %v983, 7
        %v985 = vsub.s32 3, %v984
        %v986 = vrot.slane %v969, %v985
        %v987 = vlaneseq
        %v988 = vshrl.u32 %v987, 7
        %v989 = vsub.s32 4, %v988
        %v990 = vrot.slane %v969, %v989
        %v991 = vlaneseq
        %v992 = vshrl.u32 %v991, 7
        %v993 = vsub.s32 5, %v992
        %v994 = vrot.slane %v969, %v993
        %v995 = vlaneseq
        %v996 = vshrl.u32 %v995, 7
        %v997 = vsub.s32 6, %v996
        %v998 = vrot.slane %v969, %v997
        %v999 = vlaneseq
        %v1000 = vshrl.u32 %v999, 7
        %v1001 = vsub.s32 7, %v1000
        %v1002 = vrot.slane %v969, %v1001
        %v1011 = vmul.f32 %v879, %v974
        %v1012 = vmul.f32 %v881, %v978
        %v1013 = vmul.f32 %v883, %v982
        %v1014 = vmul.f32 %v885, %v986
        %v1015 = vmul.f32 %v887, %v990
        %v1016 = vmul.f32 %v889, %v994
        %v1017 = vmul.f32 %v891, %v998
        %v1018 = vmul.f32 %v893, %v1002
        %v1019 = vld [vmem:[%s5] sm:$0x1]
        %v1021 = vlaneseq
        %v1022 = vshrl.u32 %v1021, 7
        %v1023 = vsub.s32 0, %v1022
        %v1024 = vrot.slane %v1019, %v1023
        %v1026 = vmul.f32 %v1024, %v388
        %v1027 = vmul.f32 %v1024, %v389
        %v1028 = vmul.f32 %v1024, %v390
        %v1029 = vmul.f32 %v1024, %v391
        %v1030 = vmul.f32 %v1024, %v392
        %v1031 = vmul.f32 %v1024, %v393
        %v1032 = vmul.f32 %v1024, %v394
        %v1033 = vmul.f32 %v1024, %v395
        %v1034 = vsel %vm407, %v1026, 0.0
        %1035 = vadd.xlane.f32.xlu0 %v1034
        %v1036 = vpop.xlane.xlu0 %1035
        %v1037 = vsel %vm407, %v1027, 0.0
        %1038 = vadd.xlane.f32.xlu0 %v1037
        %v1039 = vpop.xlane.xlu0 %1038
        %v1040 = vsel %vm407, %v1028, 0.0
        %1041 = vadd.xlane.f32.xlu0 %v1040
        %v1042 = vpop.xlane.xlu0 %1041
        %v1043 = vsel %vm407, %v1029, 0.0
        %1044 = vadd.xlane.f32.xlu0 %v1043
        %v1045 = vpop.xlane.xlu0 %1044
        %v1046 = vsel %vm407, %v1030, 0.0
        %1047 = vadd.xlane.f32.xlu0 %v1046
        %v1048 = vpop.xlane.xlu0 %1047
        %v1049 = vsel %vm407, %v1031, 0.0
        %1050 = vadd.xlane.f32.xlu0 %v1049
        %v1051 = vpop.xlane.xlu0 %1050
        %v1052 = vsel %vm407, %v1032, 0.0
        %1053 = vadd.xlane.f32.xlu0 %v1052
        %v1054 = vpop.xlane.xlu0 %1053
        %v1055 = vsel %vm407, %v1033, 0.0
        %1056 = vadd.xlane.f32.xlu0 %v1055
        %v1057 = vpop.xlane.xlu0 %1056
        %v1058 = vld [vmem:[#allocation2] sm:$0x1]
        %v1060 = vlaneseq
        %v1061 = vshrl.u32 %v1060, 7
        %v1062 = vsub.s32 0, %v1061
        %v1063 = vrot.slane %v1058, %v1062
        %1064 = vset.pattern.permute.xlu0 0
        %1065 = vperm.xlu0 %1064, %v1063
        %v1066 = vpop.permute.xlu0 %1065
        %v1068 = vadd.f32 %v1036, %v1066
        %v1069 = vadd.f32 %v1039, %v1066
        %v1070 = vadd.f32 %v1042, %v1066
        %v1071 = vadd.f32 %v1045, %v1066
        %v1072 = vadd.f32 %v1048, %v1066
        %v1073 = vadd.f32 %v1051, %v1066
        %v1074 = vadd.f32 %v1054, %v1066
        %v1075 = vadd.f32 %v1057, %v1066
        %1084 = vset.pattern.permute.xlu0 0
        %1085 = vperm.xlu0 %1084, %v1011
        %v1086 = vpop.permute.xlu0 %1085
        %1087 = vset.pattern.permute.xlu0 0
        %1088 = vperm.xlu0 %1087, %v1012
        %v1089 = vpop.permute.xlu0 %1088
        %1090 = vset.pattern.permute.xlu0 0
        %1091 = vperm.xlu0 %1090, %v1013
        %v1092 = vpop.permute.xlu0 %1091
        %1093 = vset.pattern.permute.xlu0 0
        %1094 = vperm.xlu0 %1093, %v1014
        %v1095 = vpop.permute.xlu0 %1094
        %1096 = vset.pattern.permute.xlu0 0
        %1097 = vperm.xlu0 %1096, %v1015
        %v1098 = vpop.permute.xlu0 %1097
        %1099 = vset.pattern.permute.xlu0 0
        %1100 = vperm.xlu0 %1099, %v1016
        %v1101 = vpop.permute.xlu0 %1100
        %1102 = vset.pattern.permute.xlu0 0
        %1103 = vperm.xlu0 %1102, %v1017
        %v1104 = vpop.permute.xlu0 %1103
        %1105 = vset.pattern.permute.xlu0 0
        %1106 = vperm.xlu0 %1105, %v1018
        %v1107 = vpop.permute.xlu0 %1106
        %v1108 = vlaneseq
        %v1109 = vshrl.u32 %v1108, 7
        %v1110 = vsub.s32 %v777, %v1109
        %v1111 = vrot.slane %v1086, %v1110
        %v1112 = vlaneseq
        %v1113 = vshrl.u32 %v1112, 7
        %v1114 = vsub.s32 %v777, %v1113
        %v1115 = vrot.slane %v1089, %v1114
        %v1116 = vlaneseq
        %v1117 = vshrl.u32 %v1116, 7
        %v1118 = vsub.s32 %v777, %v1117
        %v1119 = vrot.slane %v1092, %v1118
        %v1120 = vlaneseq
        %v1121 = vshrl.u32 %v1120, 7
        %v1122 = vsub.s32 %v777, %v1121
        %v1123 = vrot.slane %v1095, %v1122
        %v1124 = vlaneseq
        %v1125 = vshrl.u32 %v1124, 7
        %v1126 = vsub.s32 %v777, %v1125
        %v1127 = vrot.slane %v1098, %v1126
        %v1128 = vlaneseq
        %v1129 = vshrl.u32 %v1128, 7
        %v1130 = vsub.s32 %v777, %v1129
        %v1131 = vrot.slane %v1101, %v1130
        %v1132 = vlaneseq
        %v1133 = vshrl.u32 %v1132, 7
        %v1134 = vsub.s32 %v777, %v1133
        %v1135 = vrot.slane %v1104, %v1134
        %v1136 = vlaneseq
        %v1137 = vshrl.u32 %v1136, 7
        %v1138 = vsub.s32 %v777, %v1137
        %v1139 = vrot.slane %v1107, %v1138
        %v1140 = vsel %vm810, %v1115, %v1111
        %v1141 = vsel %vm812, %v1119, %v1140
        %v1142 = vsel %vm814, %v1123, %v1141
        %v1143 = vsel %vm816, %v1127, %v1142
        %v1144 = vsel %vm818, %v1131, %v1143
        %v1145 = vsel %vm820, %v1135, %v1144
        %v1146 = vsel %vm822, %v1139, %v1145
        %1148 = vst.msk [vmem:[%s382] sm:$0xff] %vm825, %v1146
        %v1149 = vmul.f32 %v1011, %v1068
        %v1150 = vmul.f32 %v1012, %v1069
        %v1151 = vmul.f32 %v1013, %v1070
        %v1152 = vmul.f32 %v1014, %v1071
        %v1153 = vmul.f32 %v1015, %v1072
        %v1154 = vmul.f32 %v1016, %v1073
        %v1155 = vmul.f32 %v1017, %v1074
        %v1156 = vmul.f32 %v1018, %v1075
        %1165 = vset.pattern.permute.xlu0 0
        %1166 = vperm.xlu0 %1165, %v1149
        %v1167 = vpop.permute.xlu0 %1166
        %1168 = vset.pattern.permute.xlu0 0
        %1169 = vperm.xlu0 %1168, %v1150
        %v1170 = vpop.permute.xlu0 %1169
        %1171 = vset.pattern.permute.xlu0 0
        %1172 = vperm.xlu0 %1171, %v1151
        %v1173 = vpop.permute.xlu0 %1172
        %1174 = vset.pattern.permute.xlu0 0
        %1175 = vperm.xlu0 %1174, %v1152
        %v1176 = vpop.permute.xlu0 %1175
        %1177 = vset.pattern.permute.xlu0 0
        %1178 = vperm.xlu0 %1177, %v1153
        %v1179 = vpop.permute.xlu0 %1178
        %1180 = vset.pattern.permute.xlu0 0
        %1181 = vperm.xlu0 %1180, %v1154
        %v1182 = vpop.permute.xlu0 %1181
        %1183 = vset.pattern.permute.xlu0 0
        %1184 = vperm.xlu0 %1183, %v1155
        %v1185 = vpop.permute.xlu0 %1184
        %1186 = vset.pattern.permute.xlu0 0
        %1187 = vperm.xlu0 %1186, %v1156
        %v1188 = vpop.permute.xlu0 %1187
        %v1189 = vlaneseq
        %v1190 = vshrl.u32 %v1189, 7
        %v1191 = vsub.s32 %v777, %v1190
        %v1192 = vrot.slane %v1167, %v1191
        %v1193 = vlaneseq
        %v1194 = vshrl.u32 %v1193, 7
        %v1195 = vsub.s32 %v777, %v1194
        %v1196 = vrot.slane %v1170, %v1195
        %v1197 = vlaneseq
        %v1198 = vshrl.u32 %v1197, 7
        %v1199 = vsub.s32 %v777, %v1198
        %v1200 = vrot.slane %v1173, %v1199
        %v1201 = vlaneseq
        %v1202 = vshrl.u32 %v1201, 7
        %v1203 = vsub.s32 %v777, %v1202
        %v1204 = vrot.slane %v1176, %v1203
        %v1205 = vlaneseq
        %v1206 = vshrl.u32 %v1205, 7
        %v1207 = vsub.s32 %v777, %v1206
        %v1208 = vrot.slane %v1179, %v1207
        %v1209 = vlaneseq
        %v1210 = vshrl.u32 %v1209, 7
        %v1211 = vsub.s32 %v777, %v1210
        %v1212 = vrot.slane %v1182, %v1211
        %v1213 = vlaneseq
        %v1214 = vshrl.u32 %v1213, 7
        %v1215 = vsub.s32 %v777, %v1214
        %v1216 = vrot.slane %v1185, %v1215
        %v1217 = vlaneseq
        %v1218 = vshrl.u32 %v1217, 7
        %v1219 = vsub.s32 %v777, %v1218
        %v1220 = vrot.slane %v1188, %v1219
        %v1221 = vsel %vm810, %v1196, %v1192
        %v1222 = vsel %vm812, %v1200, %v1221
        %v1223 = vsel %vm814, %v1204, %v1222
        %v1224 = vsel %vm816, %v1208, %v1223
        %v1225 = vsel %vm818, %v1212, %v1224
        %v1226 = vsel %vm820, %v1216, %v1225
        %v1227 = vsel %vm822, %v1220, %v1226
        %1229 = vst.msk [vmem:[%s386] sm:$0xff] %vm825, %v1227
        %p1230 = scmp.lt.s32.totalorder %s26, 1
        %s1231 = scalar_select %p1230, %s26, 1
        %s1232 = smul.addr %s1231, 8
        %s1233 = scalar_lea.vmem %s7, %s1232
        %p1234 = scmp.lt.s32.totalorder %s26, 1
        %s1235 = scalar_select %p1234, %s26, 1
        %s1236 = smul.addr %s1235, 8
        %s1237 = scalar_lea.vmem %s8, %s1236
        // Predicated region
        $region57: #{tpu_custom_call.1} parent=47 // pred_check
          %p1238 = pneg %p206
        $region58: #{tpu_custom_call.1} parent=47 // pred_check_branch
          %1240 = sbr.rel (%p1238) target = $region60
        $region59: #{tpu_custom_call.1} parent=47 // pred_region
          _
        $region60: #{tpu_custom_call.1} parent=47 // pred_fallthru
          _
        // Predicated region
        $region61: #{tpu_custom_call.1} parent=47 // pred_check
          %p1241 = pneg %p232
        $region62: #{tpu_custom_call.1} parent=47 // pred_check_branch
          %1243 = sbr.rel (%p1241) target = $region64
        $region63: #{tpu_custom_call.1} parent=47 // pred_region
          _
        $region64: #{tpu_custom_call.1} parent=47 // pred_fallthru
          _
      $region48: #{tpu_custom_call.1} parent=5 // pred_fallthru
        _
      %p1244 = scmp.le.s32.totalorder 2, %s21
      // Predicated region
      $region65: #{tpu_custom_call.1} parent=5 // pred_check
        %p1245 = pneg %p1244
      $region66: #{tpu_custom_call.1} parent=5 // pred_check_branch
        %1247 = sbr.rel (%p1245) target = $region68
      $region67: #{tpu_custom_call.1} parent=5 // pred_region
        %s1248 = ssub.s32 %s21, 2
        // Predicated region
        $region69: #{tpu_custom_call.1} parent=67 // pred_check
          %p1249 = pneg %p212
        $region70: #{tpu_custom_call.1} parent=67 // pred_check_branch
          %1251 = sbr.rel (%p1249) target = $region72
        $region71: #{tpu_custom_call.1} parent=67 // pred_region
          %p1252 = scmp.lt.s32.totalorder %s27, 1
          %s1253 = scalar_select %p1252, %s27, 1
          %s1254 = smul.addr %s1253, 8
          %s1255 = scalar_lea.vmem %s7, %s1254
        $region72: #{tpu_custom_call.1} parent=67 // pred_fallthru
          _
        // Predicated region
        $region73: #{tpu_custom_call.1} parent=67 // pred_check
          %p1256 = pneg %p238
        $region74: #{tpu_custom_call.1} parent=67 // pred_check_branch
          %1258 = sbr.rel (%p1256) target = $region76
        $region75: #{tpu_custom_call.1} parent=67 // pred_region
          %p1259 = scmp.lt.s32.totalorder %s27, 1
          %s1260 = scalar_select %p1259, %s27, 1
          %s1261 = smul.addr %s1260, 8
          %s1262 = scalar_lea.vmem %s8, %s1261
        $region76: #{tpu_custom_call.1} parent=67 // pred_fallthru
          _
      $region68: #{tpu_custom_call.1} parent=5 // pred_fallthru
        _
    $region6: #{tpu_custom_call.1} parent=1 // loop_footer
      %s25 = sadd.s32 1, %s21
    $region7: #{tpu_custom_call.1} parent=1 // loop_footer_branch
      %20 = sbr.rel target = $region3
    $region8: #{tpu_custom_call.1} parent=1 // loop_exit
      _
    %1263 = vsyncpa [#allocation4], 1
    %s1264 = scalar_lea.sflag [#allocation4], 1
    %1265 = vsyncpa %s1264, 1
    %1266 = vsyncpa [#allocation6], 1

</llo_original>
